<compile_context>
chip_gen: v7x
topology: tpu7x:2x2x1
jax: 0.10.0
libtpu: 0.0.40
codegen_flags: <defaults>
</compile_context>

<pallas_src>
import functools

import jax
import jax.numpy as jnp
import numpy as np
from jax.experimental import pallas as pl
from jax.experimental.pallas import tpu as pltpu

_EPS = 1e-5


def tf_encoder_kernel(x_ref, fcat_ref, w12_ref, prpp_ref, fqw_ref,
                      t1w_ref, t2w_ref, prm_ref, avg_ref, msk_ref,
                      feat_ref, xft_ref, *, B, L):
    BL = B * L
    M2 = w12_ref.shape[1]          # 2 * fourier_modes
    MID = fqw_ref.shape[1]         # mid_channels
    MID2 = 2 * MID
    bf16 = jnp.bfloat16

    x = x_ref[...]                 # (BL, C) f32, row = b*L + l, channels on lanes
    prm = prm_ref[...]             # (10, max(2M, 2MID)) packed BN gamma/beta rows
    keep_prev = msk_ref[:, 0:1]    # (BL, 1): 0.0 where l == 0 (zero padding)
    keep_next = msk_ref[:, 1:2]    # (BL, 1): 0.0 where l == L-1

    # ---- torch.fft.fft(x, dim=2): FACTORED DFT.  One shared (2L, L)
    #      [cos; -sin] operand, one matmul per batch (B is small; for large B
    #      this unrolled loop would become a grid axis / fori_loop).  Kept in
    #      f32 so the returned spectrum stays tight. ----
    fcat = fcat_ref[...]                                        # (2L, L) f32
    blocks = []
    for b in range(B):                                          # static unroll
        fb = jnp.dot(fcat, x[b * L:(b + 1) * L, :],
                     preferred_element_type=jnp.float32)        # (2L, C)
        blocks.append(jnp.concatenate([fb[:L], fb[L:]], axis=1))  # (L, 2C) [Re|Im]
    spec = jnp.concatenate(blocks, axis=0)                      # (BL, 2C)
    xft_ref[...] = spec                                         # one lane-adjacent store

    # ---- one-pass training-mode BatchNorm1d (var = E[y^2] - mean^2),
    #      fused across lane-adjacent branch pairs (per-lane stats are
    #      independent, so concatenated gamma/beta are bit-identical). ----
    inv_n = 1.0 / BL

    def bn(y, idx, w):
        gamma = prm[idx:idx + 1, :w]
        beta = prm[idx + 1:idx + 2, :w]
        s1 = jnp.sum(y, axis=0, keepdims=True)
        s2 = jnp.sum(y * y, axis=0, keepdims=True)
        mean = s1 * inv_n
        var = s2 * inv_n - mean * mean
        return (y - mean) * jax.lax.rsqrt(var + _EPS) * gamma + beta

    # ---- weights1/weights2 + bn_r/bn_p: ONE block-diagonal matmul + fused BN ----
    rq = bn(jnp.dot(spec.astype(bf16), w12_ref[...],
                    preferred_element_type=jnp.float32), 0, M2)          # (BL, 2M)

    # ---- projection_r / projection_p (Conv1d k=1 + BN; bias cancelled): fused ----
    rq = bn(jnp.dot(rq.astype(bf16), prpp_ref[...],
                    preferred_element_type=jnp.float32), 2, MID2)        # (BL, 2MID)

    # ---- freq_projection: lane-adjacent [real | imag] IS torch.cat(dim=1) ----
    freq = bn(jnp.dot(rq.astype(bf16), fqw_ref[...],
                      preferred_element_type=jnp.float32), 4, MID)       # (BL, MID)

    # ---- time_encoder: Conv1d(k=3, p=1) as ONE matmul per conv (taps stacked
    #      on the output axis) + sublane rolls + precomputed boundary masks ----
    def conv3(act_bf, w_ref):
        y = jnp.dot(act_bf, w_ref[...], preferred_element_type=jnp.float32)  # (BL, 3*MID)
        y_prev = pltpu.roll(y[:, :MID], shift=1, axis=0) * keep_prev   # tap0 @ x[l-1]
        y_ctr = y[:, MID:2 * MID]                                      # tap1 @ x[l]
        y_next = pltpu.roll(y[:, 2 * MID:], shift=BL - 1, axis=0) * keep_next  # tap2 @ x[l+1]
        return y_prev + y_ctr + y_next

    t = bn(conv3(x.astype(bf16), t1w_ref), 6, MID)
    t = jnp.maximum(t, 0.0)
    t = bn(conv3(t.astype(bf16), t2w_ref), 8, MID)

    # ---- temporal mean via the precomputed (B, BL) averaging matrix; the
    #      final channel concat collapses to ONE feature store ----
    avg = avg_ref[...]
    feat_ref[...] = jnp.concatenate(
        [jnp.dot(avg, freq, preferred_element_type=jnp.float32),
         jnp.dot(avg, t, preferred_element_type=jnp.float32)], axis=1)


def init_params(key, C, M, mid):
    ks = jax.random.split(key, 12)

    def nrm(k, shape, scale=0.1):
        return (scale * jax.random.normal(k, shape)).astype(jnp.float32)

    ones = lambda n: jnp.ones((n,), jnp.float32)
    zeros = lambda n: jnp.zeros((n,), jnp.float32)
    p = {
        'w1': nrm(ks[0], (M, C), 1.0), 'w2': nrm(ks[1], (M, C), 1.0),
        'bnr_g': ones(M), 'bnr_b': zeros(M), 'bnp_g': ones(M), 'bnp_b': zeros(M),
        'pr_w': nrm(ks[2], (mid, M)), 'pr_b': nrm(ks[3], (mid,)),
        'pr_g': ones(mid), 'pr_be': zeros(mid),
        'pp_w': nrm(ks[4], (mid, M)), 'pp_b': nrm(ks[5], (mid,)),
        'pp_g': ones(mid), 'pp_be': zeros(mid),
        'fq_w': nrm(ks[6], (mid, 2 * mid)), 'fq_b': nrm(ks[7], (mid,)),
        'fq_g': ones(mid), 'fq_be': zeros(mid),
        't1_w': nrm(ks[8], (mid, C, 3)), 't1_b': nrm(ks[9], (mid,)),
        't1_g': ones(mid), 't1_be': zeros(mid),
        't2_w': nrm(ks[10], (mid, mid, 3)), 't2_b': nrm(ks[11], (mid,)),
        't2_g': ones(mid), 't2_be': zeros(mid),
    }
    return p


def tf_encoder_forward(x_ncl, p):
    B, C, L = x_ncl.shape
    M = p['w1'].shape[0]
    mid = p['pr_w'].shape[0]
    BL = B * L
    assert BL % 8 == 0, "B*L must be a multiple of 8 (TPU sublane tiling)"

    x_flat = jnp.transpose(x_ncl, (0, 2, 1)).astype(jnp.float32).reshape(BL, C)

    # Factored DFT operand: one (2L, L) [cos; -sin] matrix shared by every
    # batch (no kron(eye(B), .)).  n*k mod L is done in int64 before the cast
    # so the phase stays exact even when n*k exceeds the f32 mantissa.
    n = np.arange(L, dtype=np.int64)
    km = (n[:, None] * n[None, :]) % L
    ang = (2.0 * np.pi / L) * km.astype(np.float64)
    fcat = jnp.asarray(np.concatenate([np.cos(ang), -np.sin(ang)], axis=0),
                       jnp.float32)                                    # (2L, L)

    # Block-diagonal stacked weights (pre-transposed to (in, out)), cast bf16
    # so every channel-contracting matmul feeds the MXU at native width.
    bf16 = jnp.bfloat16

    def blockdiag(a, b):
        ra, ca = a.shape
        rb, cb = b.shape
        out = jnp.zeros((ra + rb, ca + cb), jnp.float32)
        return out.at[:ra, :ca].set(a).at[ra:, ca:].set(b)

    w12 = blockdiag(p['w1'].T, p['w2'].T).astype(bf16)                 # (2C, 2M)
    prpp = blockdiag(p['pr_w'].T, p['pp_w'].T).astype(bf16)            # (2M, 2mid)
    fqw = p['fq_w'].T.astype(bf16)                                     # (2mid, mid)
    t1w = jnp.concatenate([p['t1_w'][:, :, k].T for k in range(3)],
                          axis=1).astype(bf16)                         # (C, 3*mid)
    t2w = jnp.concatenate([p['t2_w'][:, :, k].T for k in range(3)],
                          axis=1).astype(bf16)                         # (mid, 3*mid)

    # BN gamma/beta packed into ONE operand, rows fused across branch pairs.
    # Conv biases are NOT passed: constant per-channel bias is exactly
    # cancelled by training-mode BN.
    W = max(2 * M, 2 * mid)
    rows = [
        jnp.concatenate([p['bnr_g'], p['bnp_g']]),
        jnp.concatenate([p['bnr_b'], p['bnp_b']]),
        jnp.concatenate([p['pr_g'], p['pp_g']]),
        jnp.concatenate([p['pr_be'], p['pp_be']]),
        p['fq_g'], p['fq_be'], p['t1_g'], p['t1_be'], p['t2_g'], p['t2_be'],
    ]
    prm = jnp.stack([jnp.zeros((W,), jnp.float32).at[:r.shape[0]].set(
        r.astype(jnp.float32)) for r in rows])                         # (10, W)

    # Hoisted constants: conv3 boundary masks and the per-batch temporal
    # averaging matrix (no per-invocation iota/compare/select in the kernel).
    l_idx = np.arange(BL) % L
    msk = jnp.asarray(np.stack([(l_idx != 0), (l_idx != L - 1)], axis=1),
                      jnp.float32)                                     # (BL, 2)
    avg = jnp.asarray(
        (np.arange(BL)[None, :] // L == np.arange(B)[:, None]).astype(np.float64)
        / L, jnp.float32)                                              # (B, BL)

    inputs = [x_flat, fcat, w12, prpp, fqw, t1w, t2w, prm, avg, msk]

    out_shape = (
        jax.ShapeDtypeStruct((B, 2 * mid), jnp.float32),   # features
        jax.ShapeDtypeStruct((BL, 2 * C), jnp.float32),    # [Re | Im] spectrum slab
    )
    vmem = lambda: pl.BlockSpec(memory_space=pltpu.MemorySpace.VMEM)
    feats, spec = pl.pallas_call(
        functools.partial(tf_encoder_kernel, B=B, L=L),
        out_shape=out_shape,
        in_specs=[vmem() for _ in inputs],
        out_specs=tuple(vmem() for _ in range(2)),
    )(*inputs)

    # Glue: back to PyTorch (B, C, L) layout and assemble the complex spectrum.
    re = spec[:, :C].reshape(B, L, C)
    im = spec[:, C:].reshape(B, L, C)
    x_ft = jnp.transpose(re, (0, 2, 1)) + 1j * jnp.transpose(im, (0, 2, 1))
    return feats, x_ft


def reference_forward(x_ncl, p):
    # Plain-JAX f32 reference mirroring the PyTorch forward (training-mode BN,
    # conv biases included -- the kernel drops them because BN cancels them).
    eps = 1e-5
    x = x_ncl.astype(jnp.float32)
    x_ft = jnp.fft.fft(x, axis=2)
    real, imag = jnp.real(x_ft), jnp.imag(x_ft)

    def bn(y, g, b):
        mean = y.mean(axis=(0, 2), keepdims=True)
        var = ((y - mean) ** 2).mean(axis=(0, 2), keepdims=True)
        return (y - mean) / jnp.sqrt(var + eps) * g[None, :, None] + b[None, :, None]

    def conv1(y, w, b):
        return jnp.einsum('oi,bil->bol', w, y) + b[None, :, None]

    def conv3(y, w, b):
        yp = jnp.pad(y, ((0, 0), (0, 0), (1, 1)))
        L = y.shape[2]
        out = sum(jnp.einsum('oi,bil->bol', w[:, :, k], yp[:, :, k:k + L])
                  for k in range(3))
        return out + b[None, :, None]

    real = bn(jnp.einsum('mc,bcl->bml', p['w1'], real), p['bnr_g'], p['bnr_b'])
    imag = bn(jnp.einsum('mc,bcl->bml', p['w2'], imag), p['bnp_g'], p['bnp_b'])
    real = bn(conv1(real, p['pr_w'], p['pr_b']), p['pr_g'], p['pr_be'])
    imag = bn(conv1(imag, p['pp_w'], p['pp_b']), p['pp_g'], p['pp_be'])
    freq = bn(conv1(jnp.concatenate([real, imag], axis=1), p['fq_w'], p['fq_b']),
              p['fq_g'], p['fq_be'])
    t = bn(conv3(x, p['t1_w'], p['t1_b']), p['t1_g'], p['t1_be'])
    t = jnp.maximum(t, 0.0)
    t = bn(conv3(t, p['t2_w'], p['t2_b']), p['t2_g'], p['t2_be'])
    feats = jnp.concatenate([freq, t], axis=1).mean(axis=2)
    return feats, x_ft


if __name__ == "__main__":
    # configs: input_channels=4, sequence length=16, fourier_modes=8, mid_channels=32
    B, C, L = 2, 4, 16
    M, MID = 8, 32

    key = jax.random.PRNGKey(0)
    kx, kp = jax.random.split(key)
    x = jax.random.normal(kx, (B, C, L), dtype=jnp.float32)   # NCL, like PyTorch
    params = init_params(kp, C, M, MID)

    feats, x_ft = tf_encoder_forward(x, params)
    jax.block_until_ready((feats, x_ft))

    ref_feats, ref_xft = reference_forward(x, params)
    assert feats.shape == (B, 2 * MID)
    assert x_ft.shape == (B, C, L)
    # Features use bf16 MXU operands (f32 accumulation) vs an all-f32 reference.
    np.testing.assert_allclose(np.asarray(feats), np.asarray(ref_feats),
                               rtol=4e-2, atol=4e-2)
    # The DFT / spectrum path is kept in f32, so x_ft stays tight.
    np.testing.assert_allclose(np.asarray(jnp.real(x_ft)), np.asarray(jnp.real(ref_xft)),
                               rtol=1e-2, atol=1e-2)
    np.testing.assert_allclose(np.asarray(jnp.imag(x_ft)), np.asarray(jnp.imag(ref_xft)),
                               rtol=1e-2, atol=1e-2)
    print("KERNEL_OK")
</pallas_src>

<mosaic_0001>
module attributes {stable_mosaic.version = 11 : i64} {
  func.func @tf_encoder_kernel(%arg0: memref<32x4xf32, #tpu.memory_space<vmem>>, %arg1: memref<32x16xf32, #tpu.memory_space<vmem>>, %arg2: memref<8x16xbf16, #tpu.memory_space<vmem>>, %arg3: memref<16x64xbf16, #tpu.memory_space<vmem>>, %arg4: memref<64x32xbf16, #tpu.memory_space<vmem>>, %arg5: memref<4x96xbf16, #tpu.memory_space<vmem>>, %arg6: memref<32x96xbf16, #tpu.memory_space<vmem>>, %arg7: memref<10x64xf32, #tpu.memory_space<vmem>>, %arg8: memref<2x32xf32, #tpu.memory_space<vmem>>, %arg9: memref<32x2xf32, #tpu.memory_space<vmem>>, %arg10: memref<2x64xf32, #tpu.memory_space<vmem>>, %arg11: memref<32x8xf32, #tpu.memory_space<vmem>>) attributes {dimension_semantics = [], scalar_prefetch = 0 : i64, scratch_operands = 0 : i64, tpu.core_type = #tpu.core_type<tc>} {
    %c0 = arith.constant 0 : index
    %c0_0 = arith.constant 0 : index
    %0 = vector.load %arg0[%c0, %c0_0] : memref<32x4xf32, #tpu.memory_space<vmem>>, vector<32x4xf32>
    %c0_1 = arith.constant 0 : index
    %c0_2 = arith.constant 0 : index
    %1 = vector.load %arg7[%c0_1, %c0_2] : memref<10x64xf32, #tpu.memory_space<vmem>>, vector<10x64xf32>
    %c0_3 = arith.constant 0 : index
    %c0_4 = arith.constant 0 : index
    %2 = vector.load %arg9[%c0_3, %c0_4] : memref<32x2xf32, #tpu.memory_space<vmem>>, vector<32x1xf32>
    %c0_5 = arith.constant 0 : index
    %c1 = arith.constant 1 : index
    %3 = vector.load %arg9[%c0_5, %c1] : memref<32x2xf32, #tpu.memory_space<vmem>>, vector<32x1xf32>
    %c0_6 = arith.constant 0 : index
    %c0_7 = arith.constant 0 : index
    %4 = vector.load %arg1[%c0_6, %c0_7] : memref<32x16xf32, #tpu.memory_space<vmem>>, vector<32x16xf32>
    %5 = vector.extract_strided_slice %0 {offsets = [0, 0], sizes = [16, 4], strides = [1, 1]} : vector<32x4xf32> to vector<16x4xf32>
    %cst = arith.constant dense<0.000000e+00> : vector<32x4xf32>
    %6 = tpu.matmul %4, %5, %cst {dimension_numbers = #tpu.dot_dimension_numbers<[1], [0], [0], [1], [0, 0, 1, 1], [], []>} : vector<32x16xf32>, vector<16x4xf32>, vector<32x4xf32> -> vector<32x4xf32>
    %7 = vector.extract_strided_slice %6 {offsets = [0, 0], sizes = [16, 4], strides = [1, 1]} : vector<32x4xf32> to vector<16x4xf32>
    %8 = vector.extract_strided_slice %6 {offsets = [16, 0], sizes = [16, 4], strides = [1, 1]} : vector<32x4xf32> to vector<16x4xf32>
    %9 = tpu.concatenate %7, %8 in 1 : vector<16x4xf32>, vector<16x4xf32> -> vector<16x8xf32>
    %10 = vector.extract_strided_slice %0 {offsets = [16, 0], sizes = [16, 4], strides = [1, 1]} : vector<32x4xf32> to vector<16x4xf32>
    %cst_8 = arith.constant dense<0.000000e+00> : vector<32x4xf32>
    %11 = tpu.matmul %4, %10, %cst_8 {dimension_numbers = #tpu.dot_dimension_numbers<[1], [0], [0], [1], [0, 0, 1, 1], [], []>} : vector<32x16xf32>, vector<16x4xf32>, vector<32x4xf32> -> vector<32x4xf32>
    %12 = vector.extract_strided_slice %11 {offsets = [0, 0], sizes = [16, 4], strides = [1, 1]} : vector<32x4xf32> to vector<16x4xf32>
    %13 = vector.extract_strided_slice %11 {offsets = [16, 0], sizes = [16, 4], strides = [1, 1]} : vector<32x4xf32> to vector<16x4xf32>
    %14 = tpu.concatenate %12, %13 in 1 : vector<16x4xf32>, vector<16x4xf32> -> vector<16x8xf32>
    %15 = tpu.concatenate %9, %14 in 0 : vector<16x8xf32>, vector<16x8xf32> -> vector<32x8xf32>
    %c0_9 = arith.constant 0 : index
    %c0_10 = arith.constant 0 : index
    %16 = vector.load %arg11[%c0_9, %c0_10] : memref<32x8xf32, #tpu.memory_space<vmem>>, vector<32x8xf32>
    tpu.vector_store %arg11[%c0_9, %c0_10], %15 {strides = array<i32>} : memref<32x8xf32, #tpu.memory_space<vmem>>, vector<32x8xf32>,
    %17 = arith.truncf %15 : vector<32x8xf32> to vector<32x8xbf16>
    %c0_11 = arith.constant 0 : index
    %c0_12 = arith.constant 0 : index
    %18 = vector.load %arg2[%c0_11, %c0_12] : memref<8x16xbf16, #tpu.memory_space<vmem>>, vector<8x16xbf16>
    %cst_13 = arith.constant dense<0.000000e+00> : vector<32x16xf32>
    %19 = tpu.matmul %17, %18, %cst_13 {dimension_numbers = #tpu.dot_dimension_numbers<[1], [0], [0], [1], [0, 0, 1, 1], [], []>} : vector<32x8xbf16>, vector<8x16xbf16>, vector<32x16xf32> -> vector<32x16xf32>
    %20 = vector.extract_strided_slice %1 {offsets = [0, 0], sizes = [1, 16], strides = [1, 1]} : vector<10x64xf32> to vector<1x16xf32>
    %21 = vector.extract_strided_slice %1 {offsets = [1, 0], sizes = [1, 16], strides = [1, 1]} : vector<10x64xf32> to vector<1x16xf32>
    %cst_14 = arith.constant dense<0.000000e+00> : vector<16xf32>
    %22 = vector.multi_reduction <add>, %19, %cst_14 [0] : vector<32x16xf32> to vector<16xf32>
    %23 = vector.shape_cast %22 : vector<16xf32> to vector<1x16xf32>
    %24 = arith.mulf %19, %19 : vector<32x16xf32>
    %cst_15 = arith.constant dense<0.000000e+00> : vector<16xf32>
    %25 = vector.multi_reduction <add>, %24, %cst_15 [0] : vector<32x16xf32> to vector<16xf32>
    %26 = vector.shape_cast %25 : vector<16xf32> to vector<1x16xf32>
    %cst_16 = arith.constant 3.125000e-02 : f32
    %27 = vector.broadcast %cst_16 : f32 to vector<1x16xf32>
    %28 = arith.mulf %23, %27 : vector<1x16xf32>
    %cst_17 = arith.constant 3.125000e-02 : f32
    %29 = vector.broadcast %cst_17 : f32 to vector<1x16xf32>
    %30 = arith.mulf %26, %29 : vector<1x16xf32>
    %31 = arith.mulf %28, %28 : vector<1x16xf32>
    %32 = arith.subf %30, %31 : vector<1x16xf32>
    %33 = vector.broadcast %28 : vector<1x16xf32> to vector<32x16xf32>
    %34 = arith.subf %19, %33 : vector<32x16xf32>
    %cst_18 = arith.constant 9.99999974E-6 : f32
    %35 = vector.broadcast %cst_18 : f32 to vector<1x16xf32>
    %36 = arith.addf %32, %35 : vector<1x16xf32>
    %37 = math.rsqrt %36 : vector<1x16xf32>
    %38 = vector.broadcast %37 : vector<1x16xf32> to vector<32x16xf32>
    %39 = arith.mulf %34, %38 : vector<32x16xf32>
    %40 = vector.broadcast %20 : vector<1x16xf32> to vector<32x16xf32>
    %41 = arith.mulf %39, %40 : vector<32x16xf32>
    %42 = vector.broadcast %21 : vector<1x16xf32> to vector<32x16xf32>
    %43 = arith.addf %41, %42 : vector<32x16xf32>
    %44 = arith.truncf %43 : vector<32x16xf32> to vector<32x16xbf16>
    %c0_19 = arith.constant 0 : index
    %c0_20 = arith.constant 0 : index
    %45 = vector.load %arg3[%c0_19, %c0_20] : memref<16x64xbf16, #tpu.memory_space<vmem>>, vector<16x64xbf16>
    %cst_21 = arith.constant dense<0.000000e+00> : vector<32x64xf32>
    %46 = tpu.matmul %44, %45, %cst_21 {dimension_numbers = #tpu.dot_dimension_numbers<[1], [0], [0], [1], [0, 0, 1, 1], [], []>} : vector<32x16xbf16>, vector<16x64xbf16>, vector<32x64xf32> -> vector<32x64xf32>
    %47 = vector.extract_strided_slice %1 {offsets = [2, 0], sizes = [1, 64], strides = [1, 1]} : vector<10x64xf32> to vector<1x64xf32>
    %48 = vector.extract_strided_slice %1 {offsets = [3, 0], sizes = [1, 64], strides = [1, 1]} : vector<10x64xf32> to vector<1x64xf32>
    %cst_22 = arith.constant dense<0.000000e+00> : vector<64xf32>
    %49 = vector.multi_reduction <add>, %46, %cst_22 [0] : vector<32x64xf32> to vector<64xf32>
    %50 = vector.shape_cast %49 : vector<64xf32> to vector<1x64xf32>
    %51 = arith.mulf %46, %46 : vector<32x64xf32>
    %cst_23 = arith.constant dense<0.000000e+00> : vector<64xf32>
    %52 = vector.multi_reduction <add>, %51, %cst_23 [0] : vector<32x64xf32> to vector<64xf32>
    %53 = vector.shape_cast %52 : vector<64xf32> to vector<1x64xf32>
    %cst_24 = arith.constant 3.125000e-02 : f32
    %54 = vector.broadcast %cst_24 : f32 to vector<1x64xf32>
    %55 = arith.mulf %50, %54 : vector<1x64xf32>
    %cst_25 = arith.constant 3.125000e-02 : f32
    %56 = vector.broadcast %cst_25 : f32 to vector<1x64xf32>
    %57 = arith.mulf %53, %56 : vector<1x64xf32>
    %58 = arith.mulf %55, %55 : vector<1x64xf32>
    %59 = arith.subf %57, %58 : vector<1x64xf32>
    %60 = vector.broadcast %55 : vector<1x64xf32> to vector<32x64xf32>
    %61 = arith.subf %46, %60 : vector<32x64xf32>
    %cst_26 = arith.constant 9.99999974E-6 : f32
    %62 = vector.broadcast %cst_26 : f32 to vector<1x64xf32>
    %63 = arith.addf %59, %62 : vector<1x64xf32>
    %64 = math.rsqrt %63 : vector<1x64xf32>
    %65 = vector.broadcast %64 : vector<1x64xf32> to vector<32x64xf32>
    %66 = arith.mulf %61, %65 : vector<32x64xf32>
    %67 = vector.broadcast %47 : vector<1x64xf32> to vector<32x64xf32>
    %68 = arith.mulf %66, %67 : vector<32x64xf32>
    %69 = vector.broadcast %48 : vector<1x64xf32> to vector<32x64xf32>
    %70 = arith.addf %68, %69 : vector<32x64xf32>
    %71 = arith.truncf %70 : vector<32x64xf32> to vector<32x64xbf16>
    %c0_27 = arith.constant 0 : index
    %c0_28 = arith.constant 0 : index
    %72 = vector.load %arg4[%c0_27, %c0_28] : memref<64x32xbf16, #tpu.memory_space<vmem>>, vector<64x32xbf16>
    %cst_29 = arith.constant dense<0.000000e+00> : vector<32x32xf32>
    %73 = tpu.matmul %71, %72, %cst_29 {dimension_numbers = #tpu.dot_dimension_numbers<[1], [0], [0], [1], [0, 0, 1, 1], [], []>} : vector<32x64xbf16>, vector<64x32xbf16>, vector<32x32xf32> -> vector<32x32xf32>
    %74 = vector.extract_strided_slice %1 {offsets = [4, 0], sizes = [1, 32], strides = [1, 1]} : vector<10x64xf32> to vector<1x32xf32>
    %75 = vector.extract_strided_slice %1 {offsets = [5, 0], sizes = [1, 32], strides = [1, 1]} : vector<10x64xf32> to vector<1x32xf32>
    %cst_30 = arith.constant dense<0.000000e+00> : vector<32xf32>
    %76 = vector.multi_reduction <add>, %73, %cst_30 [0] : vector<32x32xf32> to vector<32xf32>
    %77 = vector.shape_cast %76 : vector<32xf32> to vector<1x32xf32>
    %78 = arith.mulf %73, %73 : vector<32x32xf32>
    %cst_31 = arith.constant dense<0.000000e+00> : vector<32xf32>
    %79 = vector.multi_reduction <add>, %78, %cst_31 [0] : vector<32x32xf32> to vector<32xf32>
    %80 = vector.shape_cast %79 : vector<32xf32> to vector<1x32xf32>
    %cst_32 = arith.constant 3.125000e-02 : f32
    %81 = vector.broadcast %cst_32 : f32 to vector<1x32xf32>
    %82 = arith.mulf %77, %81 : vector<1x32xf32>
    %cst_33 = arith.constant 3.125000e-02 : f32
    %83 = vector.broadcast %cst_33 : f32 to vector<1x32xf32>
    %84 = arith.mulf %80, %83 : vector<1x32xf32>
    %85 = arith.mulf %82, %82 : vector<1x32xf32>
    %86 = arith.subf %84, %85 : vector<1x32xf32>
    %87 = vector.broadcast %82 : vector<1x32xf32> to vector<32x32xf32>
    %88 = arith.subf %73, %87 : vector<32x32xf32>
    %cst_34 = arith.constant 9.99999974E-6 : f32
    %89 = vector.broadcast %cst_34 : f32 to vector<1x32xf32>
    %90 = arith.addf %86, %89 : vector<1x32xf32>
    %91 = math.rsqrt %90 : vector<1x32xf32>
    %92 = vector.broadcast %91 : vector<1x32xf32> to vector<32x32xf32>
    %93 = arith.mulf %88, %92 : vector<32x32xf32>
    %94 = vector.broadcast %74 : vector<1x32xf32> to vector<32x32xf32>
    %95 = arith.mulf %93, %94 : vector<32x32xf32>
    %96 = vector.broadcast %75 : vector<1x32xf32> to vector<32x32xf32>
    %97 = arith.addf %95, %96 : vector<32x32xf32>
    %98 = arith.truncf %0 : vector<32x4xf32> to vector<32x4xbf16>
    %c0_35 = arith.constant 0 : index
    %c0_36 = arith.constant 0 : index
    %99 = vector.load %arg5[%c0_35, %c0_36] : memref<4x96xbf16, #tpu.memory_space<vmem>>, vector<4x96xbf16>
    %cst_37 = arith.constant dense<0.000000e+00> : vector<32x96xf32>
    %100 = tpu.matmul %98, %99, %cst_37 {dimension_numbers = #tpu.dot_dimension_numbers<[1], [0], [0], [1], [0, 0, 1, 1], [], []>} : vector<32x4xbf16>, vector<4x96xbf16>, vector<32x96xf32> -> vector<32x96xf32>
    %101 = vector.extract_strided_slice %100 {offsets = [0, 0], sizes = [32, 32], strides = [1, 1]} : vector<32x96xf32> to vector<32x32xf32>
    %c1_i32 = arith.constant 1 : i32
    %102 = tpu.dynamic_rotate %101 by %c1_i32 dim 0 : vector<32x32xf32>, i32 -> vector<32x32xf32>
    %103 = vector.broadcast %2 : vector<32x1xf32> to vector<32x32xf32>
    %104 = arith.mulf %102, %103 : vector<32x32xf32>
    %105 = vector.extract_strided_slice %100 {offsets = [0, 32], sizes = [32, 32], strides = [1, 1]} : vector<32x96xf32> to vector<32x32xf32>
    %106 = vector.extract_strided_slice %100 {offsets = [0, 64], sizes = [32, 32], strides = [1, 1]} : vector<32x96xf32> to vector<32x32xf32>
    %c31_i32 = arith.constant 31 : i32
    %107 = tpu.dynamic_rotate %106 by %c31_i32 dim 0 : vector<32x32xf32>, i32 -> vector<32x32xf32>
    %108 = vector.broadcast %3 : vector<32x1xf32> to vector<32x32xf32>
    %109 = arith.mulf %107, %108 : vector<32x32xf32>
    %110 = arith.addf %104, %105 : vector<32x32xf32>
    %111 = arith.addf %110, %109 : vector<32x32xf32>
    %112 = vector.extract_strided_slice %1 {offsets = [6, 0], sizes = [1, 32], strides = [1, 1]} : vector<10x64xf32> to vector<1x32xf32>
    %113 = vector.extract_strided_slice %1 {offsets = [7, 0], sizes = [1, 32], strides = [1, 1]} : vector<10x64xf32> to vector<1x32xf32>
    %cst_38 = arith.constant dense<0.000000e+00> : vector<32xf32>
    %114 = vector.multi_reduction <add>, %111, %cst_38 [0] : vector<32x32xf32> to vector<32xf32>
    %115 = vector.shape_cast %114 : vector<32xf32> to vector<1x32xf32>
    %116 = arith.mulf %111, %111 : vector<32x32xf32>
    %cst_39 = arith.constant dense<0.000000e+00> : vector<32xf32>
    %117 = vector.multi_reduction <add>, %116, %cst_39 [0] : vector<32x32xf32> to vector<32xf32>
    %118 = vector.shape_cast %117 : vector<32xf32> to vector<1x32xf32>
    %cst_40 = arith.constant 3.125000e-02 : f32
    %119 = vector.broadcast %cst_40 : f32 to vector<1x32xf32>
    %120 = arith.mulf %115, %119 : vector<1x32xf32>
    %cst_41 = arith.constant 3.125000e-02 : f32
    %121 = vector.broadcast %cst_41 : f32 to vector<1x32xf32>
    %122 = arith.mulf %118, %121 : vector<1x32xf32>
    %123 = arith.mulf %120, %120 : vector<1x32xf32>
    %124 = arith.subf %122, %123 : vector<1x32xf32>
    %125 = vector.broadcast %120 : vector<1x32xf32> to vector<32x32xf32>
    %126 = arith.subf %111, %125 : vector<32x32xf32>
    %cst_42 = arith.constant 9.99999974E-6 : f32
    %127 = vector.broadcast %cst_42 : f32 to vector<1x32xf32>
    %128 = arith.addf %124, %127 : vector<1x32xf32>
    %129 = math.rsqrt %128 : vector<1x32xf32>
    %130 = vector.broadcast %129 : vector<1x32xf32> to vector<32x32xf32>
    %131 = arith.mulf %126, %130 : vector<32x32xf32>
    %132 = vector.broadcast %112 : vector<1x32xf32> to vector<32x32xf32>
    %133 = arith.mulf %131, %132 : vector<32x32xf32>
    %134 = vector.broadcast %113 : vector<1x32xf32> to vector<32x32xf32>
    %135 = arith.addf %133, %134 : vector<32x32xf32>
    %cst_43 = arith.constant 0.000000e+00 : f32
    %136 = vector.broadcast %cst_43 : f32 to vector<32x32xf32>
    %137 = arith.maximumf %135, %136 : vector<32x32xf32>
    %138 = arith.truncf %137 : vector<32x32xf32> to vector<32x32xbf16>
    %c0_44 = arith.constant 0 : index
    %c0_45 = arith.constant 0 : index
    %139 = vector.load %arg6[%c0_44, %c0_45] : memref<32x96xbf16, #tpu.memory_space<vmem>>, vector<32x96xbf16>
    %cst_46 = arith.constant dense<0.000000e+00> : vector<32x96xf32>
    %140 = tpu.matmul %138, %139, %cst_46 {dimension_numbers = #tpu.dot_dimension_numbers<[1], [0], [0], [1], [0, 0, 1, 1], [], []>} : vector<32x32xbf16>, vector<32x96xbf16>, vector<32x96xf32> -> vector<32x96xf32>
    %141 = vector.extract_strided_slice %140 {offsets = [0, 0], sizes = [32, 32], strides = [1, 1]} : vector<32x96xf32> to vector<32x32xf32>
    %c1_i32_47 = arith.constant 1 : i32
    %142 = tpu.dynamic_rotate %141 by %c1_i32_47 dim 0 : vector<32x32xf32>, i32 -> vector<32x32xf32>
    %143 = vector.broadcast %2 : vector<32x1xf32> to vector<32x32xf32>
    %144 = arith.mulf %142, %143 : vector<32x32xf32>
    %145 = vector.extract_strided_slice %140 {offsets = [0, 32], sizes = [32, 32], strides = [1, 1]} : vector<32x96xf32> to vector<32x32xf32>
    %146 = vector.extract_strided_slice %140 {offsets = [0, 64], sizes = [32, 32], strides = [1, 1]} : vector<32x96xf32> to vector<32x32xf32>
    %c31_i32_48 = arith.constant 31 : i32
    %147 = tpu.dynamic_rotate %146 by %c31_i32_48 dim 0 : vector<32x32xf32>, i32 -> vector<32x32xf32>
    %148 = vector.broadcast %3 : vector<32x1xf32> to vector<32x32xf32>
    %149 = arith.mulf %147, %148 : vector<32x32xf32>
    %150 = arith.addf %144, %145 : vector<32x32xf32>
    %151 = arith.addf %150, %149 : vector<32x32xf32>
    %152 = vector.extract_strided_slice %1 {offsets = [8, 0], sizes = [1, 32], strides = [1, 1]} : vector<10x64xf32> to vector<1x32xf32>
    %153 = vector.extract_strided_slice %1 {offsets = [9, 0], sizes = [1, 32], strides = [1, 1]} : vector<10x64xf32> to vector<1x32xf32>
    %cst_49 = arith.constant dense<0.000000e+00> : vector<32xf32>
    %154 = vector.multi_reduction <add>, %151, %cst_49 [0] : vector<32x32xf32> to vector<32xf32>
    %155 = vector.shape_cast %154 : vector<32xf32> to vector<1x32xf32>
    %156 = arith.mulf %151, %151 : vector<32x32xf32>
    %cst_50 = arith.constant dense<0.000000e+00> : vector<32xf32>
    %157 = vector.multi_reduction <add>, %156, %cst_50 [0] : vector<32x32xf32> to vector<32xf32>
    %158 = vector.shape_cast %157 : vector<32xf32> to vector<1x32xf32>
    %cst_51 = arith.constant 3.125000e-02 : f32
    %159 = vector.broadcast %cst_51 : f32 to vector<1x32xf32>
    %160 = arith.mulf %155, %159 : vector<1x32xf32>
    %cst_52 = arith.constant 3.125000e-02 : f32
    %161 = vector.broadcast %cst_52 : f32 to vector<1x32xf32>
    %162 = arith.mulf %158, %161 : vector<1x32xf32>
    %163 = arith.mulf %160, %160 : vector<1x32xf32>
    %164 = arith.subf %162, %163 : vector<1x32xf32>
    %165 = vector.broadcast %160 : vector<1x32xf32> to vector<32x32xf32>
    %166 = arith.subf %151, %165 : vector<32x32xf32>
    %cst_53 = arith.constant 9.99999974E-6 : f32
    %167 = vector.broadcast %cst_53 : f32 to vector<1x32xf32>
    %168 = arith.addf %164, %167 : vector<1x32xf32>
    %169 = math.rsqrt %168 : vector<1x32xf32>
    %170 = vector.broadcast %169 : vector<1x32xf32> to vector<32x32xf32>
    %171 = arith.mulf %166, %170 : vector<32x32xf32>
    %172 = vector.broadcast %152 : vector<1x32xf32> to vector<32x32xf32>
    %173 = arith.mulf %171, %172 : vector<32x32xf32>
    %174 = vector.broadcast %153 : vector<1x32xf32> to vector<32x32xf32>
    %175 = arith.addf %173, %174 : vector<32x32xf32>
    %c0_54 = arith.constant 0 : index
    %c0_55 = arith.constant 0 : index
    %176 = vector.load %arg8[%c0_54, %c0_55] : memref<2x32xf32, #tpu.memory_space<vmem>>, vector<2x32xf32>
    %cst_56 = arith.constant dense<0.000000e+00> : vector<2x32xf32>
    %177 = tpu.matmul %176, %97, %cst_56 {dimension_numbers = #tpu.dot_dimension_numbers<[1], [0], [0], [1], [0, 0, 1, 1], [], []>} : vector<2x32xf32>, vector<32x32xf32>, vector<2x32xf32> -> vector<2x32xf32>
    %cst_57 = arith.constant dense<0.000000e+00> : vector<2x32xf32>
    %178 = tpu.matmul %176, %175, %cst_57 {dimension_numbers = #tpu.dot_dimension_numbers<[1], [0], [0], [1], [0, 0, 1, 1], [], []>} : vector<2x32xf32>, vector<32x32xf32>, vector<2x32xf32> -> vector<2x32xf32>
    %179 = tpu.concatenate %177, %178 in 1 : vector<2x32xf32>, vector<2x32xf32> -> vector<2x64xf32>
    %c0_58 = arith.constant 0 : index
    %c0_59 = arith.constant 0 : index
    %180 = vector.load %arg10[%c0_58, %c0_59] : memref<2x64xf32, #tpu.memory_space<vmem>>, vector<2x64xf32>
    tpu.vector_store %arg10[%c0_58, %c0_59], %179 {strides = array<i32>} : memref<2x64xf32, #tpu.memory_space<vmem>>, vector<2x64xf32>,
    return
  }
}

</mosaic_0001>

<llo_original>
// kernel: tpu_custom_call.1
$region0: #{tpu_custom_call.1}
  #allocation0 [shape = 'u32[]', space=smem, size = 0x4, offset = 0x4, fixed_abs, tag = 'smem constant byte address 0x4 - core index']
  #allocation1 [shape = 'u32[144,128]{1,0:T(1,128)}', space=vmem, size = 0x12000, scoped, tag = 'internal scratch']
  %s0 = inlined_call_operand.vmem [shape: f32[32,4], index: 0, kind: input, shape index: {}]
  %s1 = inlined_call_operand.vmem [shape: f32[32,16], index: 1, kind: input, shape index: {}]
  %s2 = inlined_call_operand.vmem [shape: bf16[8,16], index: 2, kind: input, shape index: {}]
  %s3 = inlined_call_operand.vmem [shape: bf16[16,64], index: 3, kind: input, shape index: {}]
  %s4 = inlined_call_operand.vmem [shape: bf16[64,32], index: 4, kind: input, shape index: {}]
  %s5 = inlined_call_operand.vmem [shape: bf16[4,96], index: 5, kind: input, shape index: {}]
  %s6 = inlined_call_operand.vmem [shape: bf16[32,96], index: 6, kind: input, shape index: {}]
  %s7 = inlined_call_operand.vmem [shape: f32[10,64], index: 7, kind: input, shape index: {}]
  %s8 = inlined_call_operand.vmem [shape: f32[2,32], index: 8, kind: input, shape index: {}]
  %s9 = inlined_call_operand.vmem [shape: f32[32,2], index: 9, kind: input, shape index: {}]
  %s10 = inlined_call_operand.hbm [shape: f32[2,64], index: 10, kind: output, shape index: {0}]
  %s11 = inlined_call_operand.vmem [shape: f32[32,8], index: 11, kind: output, shape index: {1}]
  %12 = xla_tuple %s10, %s11
  %s13 = sld [smem:[#allocation0]]
  $region58: #{tpu_custom_call.1} parent=0
    _
  %s15 = ssub.s32 1, %s13
  %s16 = scalar_select 0, %s15, %s13
  $region1: #{tpu_custom_call.1} parent=0
    #allocation2 [shape = 'u8[1024]{0}', space=vmem, size = 0x400, scoped, tag = 'output window, operand 0, single buffered']
    #allocation3 [shape = 's32[1]{0}', space=sflag, size = 0x4, scoped, tag = 'scoped memory for tpu_custom_call.1']
    %17 = vsyncpa [#allocation3], 0
    // Predicated region
    $region2: #{tpu_custom_call.1} parent=1 // pred_check
      _
    $region3: #{tpu_custom_call.1} parent=1 // pred_check_branch
      %19 = sbr.rel (0) target = $region5
    $region4: #{tpu_custom_call.1} parent=1 // pred_region
      _
    $region5: #{tpu_custom_call.1} parent=1 // pred_fallthru
      _
    // Predicated region
    $region6: #{tpu_custom_call.1} parent=1 // pred_check
      _
    $region7: #{tpu_custom_call.1} parent=1 // pred_check_branch
      %21 = sbr.rel (0) target = $region9
    $region8: #{tpu_custom_call.1} parent=1 // pred_region
      _
    $region9: #{tpu_custom_call.1} parent=1 // pred_fallthru
      _
    // Predicated region
    $region10: #{tpu_custom_call.1} parent=1 // pred_check
      _
    $region11: #{tpu_custom_call.1} parent=1 // pred_check_branch
      %23 = sbr.rel (0) target = $region13
    $region12: #{tpu_custom_call.1} parent=1 // pred_region
      _
    $region13: #{tpu_custom_call.1} parent=1 // pred_fallthru
      _
    // Predicated region
    $region14: #{tpu_custom_call.1} parent=1 // pred_check
      _
    $region15: #{tpu_custom_call.1} parent=1 // pred_check_branch
      %25 = sbr.rel (0) target = $region17
    $region16: #{tpu_custom_call.1} parent=1 // pred_region
      _
    $region17: #{tpu_custom_call.1} parent=1 // pred_fallthru
      _
    // Predicated region
    $region18: #{tpu_custom_call.1} parent=1 // pred_check
      _
    $region19: #{tpu_custom_call.1} parent=1 // pred_check_branch
      %27 = sbr.rel (0) target = $region21
    $region20: #{tpu_custom_call.1} parent=1 // pred_region
      _
    $region21: #{tpu_custom_call.1} parent=1 // pred_fallthru
      _
    // Predicated region
    $region22: #{tpu_custom_call.1} parent=1 // pred_check
      _
    $region23: #{tpu_custom_call.1} parent=1 // pred_check_branch
      %29 = sbr.rel (0) target = $region25
    $region24: #{tpu_custom_call.1} parent=1 // pred_region
      _
    $region25: #{tpu_custom_call.1} parent=1 // pred_fallthru
      _
    // Predicated region
    $region26: #{tpu_custom_call.1} parent=1 // pred_check
      _
    $region27: #{tpu_custom_call.1} parent=1 // pred_check_branch
      %31 = sbr.rel (0) target = $region29
    $region28: #{tpu_custom_call.1} parent=1 // pred_region
      _
    $region29: #{tpu_custom_call.1} parent=1 // pred_fallthru
      _
    // Predicated region
    $region30: #{tpu_custom_call.1} parent=1 // pred_check
      _
    $region31: #{tpu_custom_call.1} parent=1 // pred_check_branch
      %33 = sbr.rel (0) target = $region33
    $region32: #{tpu_custom_call.1} parent=1 // pred_region
      _
    $region33: #{tpu_custom_call.1} parent=1 // pred_fallthru
      _
    // Predicated region
    $region34: #{tpu_custom_call.1} parent=1 // pred_check
      _
    $region35: #{tpu_custom_call.1} parent=1 // pred_check_branch
      %35 = sbr.rel (0) target = $region37
    $region36: #{tpu_custom_call.1} parent=1 // pred_region
      _
    $region37: #{tpu_custom_call.1} parent=1 // pred_fallthru
      _
    // Predicated region
    $region38: #{tpu_custom_call.1} parent=1 // pred_check
      _
    $region39: #{tpu_custom_call.1} parent=1 // pred_check_branch
      %37 = sbr.rel (0) target = $region41
    $region40: #{tpu_custom_call.1} parent=1 // pred_region
      _
    $region41: #{tpu_custom_call.1} parent=1 // pred_fallthru
      _
    %v39 = vld [vmem:[%s0] sm:$0xff]
    %v40 = vld [vmem:[%s0 + $0x8] sm:$0xff]
    %v41 = vld [vmem:[%s0 + $0x10] sm:$0xff]
    %v42 = vld [vmem:[%s0 + $0x18] sm:$0xff]
    %v43 = vld [vmem:[%s7] sm:$0xff]
    %v44 = vld [vmem:[%s7 + $0x8] sm:$0x3]
    %v45 = vld [vmem:[%s9] sm:$0xff]
    %v46 = vld [vmem:[%s9 + $0x8] sm:$0xff]
    %v47 = vld [vmem:[%s9 + $0x10] sm:$0xff]
    %v48 = vld [vmem:[%s9 + $0x18] sm:$0xff]
    %v49 = vld [vmem:[%s1] sm:$0xff]
    %v50 = vld [vmem:[%s1 + $0x8] sm:$0xff]
    %v51 = vld [vmem:[%s1 + $0x10] sm:$0xff]
    %v52 = vld [vmem:[%s1 + $0x18] sm:$0xff]
    %vm53 = vcmask 130048
    %v55 = vsel %vm53, %v49, 0
    %v58 = vsel %vm53, %v50, 0
    %v61 = vsel %vm53, %v51, 0
    %v64 = vsel %vm53, %v52, 0
    %66 = vmatprep.subr.mxu0 0.0
    %67 = vmatpush1.msra.mxu0 %v39
    %68 = vmatprep.subr.mxu0 0.0
    %69 = vmatpush1.msra.mxu0 %v40
    %70 = vmatprep.subr.mxu0 0.0
    %71 = vmatpush1.msra.mxu0 0.0
    %72 = vmatprep.subr.mxu0 0.0
    %73 = vmatpush1.msra.mxu0 0.0
    %74 = vmatprep.subr.mxu0 0.0
    %75 = vmatpush1.msra.mxu0 0.0
    %76 = vmatprep.subr.mxu0 0.0
    %77 = vmatpush1.msra.mxu0 0.0
    %78 = vmatprep.subr.mxu0 0.0
    %79 = vmatpush1.msra.mxu0 0.0
    %80 = vmatprep.subr.mxu0 0.0
    %81 = vmatpush1.msra.mxu0 0.0
    %82 = vmatprep.subr.mxu0 0.0
    %83 = vmatpush1.msra.mxu0 0.0
    %84 = vmatprep.subr.mxu0 0.0
    %85 = vmatpush1.msra.mxu0 0.0
    %86 = vmatprep.subr.mxu0 0.0
    %87 = vmatpush1.msra.mxu0 0.0
    %88 = vmatprep.subr.mxu0 0.0
    %89 = vmatpush1.msra.mxu0 0.0
    %90 = vmatprep.subr.mxu0 0.0
    %91 = vmatpush1.msra.mxu0 0.0
    %92 = vmatprep.subr.mxu0 0.0
    %93 = vmatpush1.msra.mxu0 0.0
    %94 = vmatprep.subr.mxu0 0.0
    %95 = vmatpush1.msra.mxu0 0.0
    %96 = vmatprep.subr.mxu0 0.0
    %97 = vmatpush1.msra.mxu0 0.0
    %98 = vmatprep.subr.mxu0 0.0
    %99 = vmatpush1.msra.mxu0 0.0
    %100 = vmatprep.subr.mxu0 0.0
    %101 = vmatpush1.msra.mxu0 0.0
    %102 = vmatprep.subr.mxu0 0.0
    %103 = vmatpush1.msra.mxu0 0.0
    %104 = vmatprep.subr.mxu0 0.0
    %105 = vmatpush1.msra.mxu0 0.0
    %106 = vmatprep.subr.mxu0 0.0
    %107 = vmatpush1.msra.mxu0 0.0
    %108 = vmatprep.subr.mxu0 0.0
    %109 = vmatpush1.msra.mxu0 0.0
    %110 = vmatprep.subr.mxu0 0.0
    %111 = vmatpush1.msra.mxu0 0.0
    %112 = vmatprep.subr.mxu0 0.0
    %113 = vmatpush1.msra.mxu0 0.0
    %114 = vmatprep.subr.mxu0 0.0
    %115 = vmatpush1.msra.mxu0 0.0
    %116 = vmatprep.subr.mxu0 0.0
    %117 = vmatpush1.msra.mxu0 0.0
    %118 = vmatprep.subr.mxu0 0.0
    %119 = vmatpush1.msra.mxu0 0.0
    %120 = vmatprep.subr.mxu0 0.0
    %121 = vmatpush1.msra.mxu0 0.0
    %122 = vmatprep.subr.mxu0 0.0
    %123 = vmatpush1.msra.mxu0 0.0
    %124 = vmatprep.subr.mxu0 0.0
    %125 = vmatpush1.msra.mxu0 0.0
    %126 = vmatprep.subr.mxu0 0.0
    %127 = vmatpush1.msra.mxu0 0.0
    %128 = vmatprep.subr.mxu0 0.0
    %129 = vmatpush1.msra.mxu0 0.0
    %130 = vmatprep.mubr.f32.mxu0 0.0
    %131 = vmatmul.mubr.f32.gmra.mrb[0].mxu0 %v55
    %v132 = vpop.f32.mrb[0].mxu0
    %v133 = vadd.f32 0.0, %v132
    %v134 = vpop.f32.mrb[0].mxu0
    %135 = vmatprep.mubr.f32.mxu0 0.0
    %136 = vmatmul.mubr.f32.gmra.mrb[0].mxu0 %v58
    %v137 = vpop.f32.mrb[0].mxu0
    %v138 = vadd.f32 0.0, %v137
    %v139 = vpop.f32.mrb[0].mxu0
    %140 = vmatprep.mubr.f32.mxu0 0.0
    %141 = vmatmul.mubr.f32.gmra.mrb[0].mxu0 %v61
    %v142 = vpop.f32.mrb[0].mxu0
    %v143 = vadd.f32 0.0, %v142
    %v144 = vpop.f32.mrb[0].mxu0
    %145 = vmatprep.mubr.f32.mxu0 0.0
    %146 = vmatmul.mubr.f32.gmra.mrb[0].mxu0 %v64
    %v147 = vpop.f32.mrb[0].mxu0
    %v148 = vadd.f32 0.0, %v147
    %v149 = vpop.f32.mrb[0].mxu0
    %150 = vdwg.mxu0
    %153 = vrot.lane.b32.xlu0 %v143, 4
    %v154 = vpop.permute.xlu0 %153
    %155 = vrot.lane.b32.xlu0 %v148, 4
    %v156 = vpop.permute.xlu0 %155
    %vm159 = vcmask 31744
    %v160 = vsel %vm159, %v133, %v154
    %v161 = vsel %vm159, %v138, %v156
    %162 = vmatprep.subr.mxu0 0.0
    %163 = vmatpush1.msra.mxu0 %v41
    %164 = vmatprep.subr.mxu0 0.0
    %165 = vmatpush1.msra.mxu0 %v42
    %166 = vmatprep.subr.mxu0 0.0
    %167 = vmatpush1.msra.mxu0 0.0
    %168 = vmatprep.subr.mxu0 0.0
    %169 = vmatpush1.msra.mxu0 0.0
    %170 = vmatprep.subr.mxu0 0.0
    %171 = vmatpush1.msra.mxu0 0.0
    %172 = vmatprep.subr.mxu0 0.0
    %173 = vmatpush1.msra.mxu0 0.0
    %174 = vmatprep.subr.mxu0 0.0
    %175 = vmatpush1.msra.mxu0 0.0
    %176 = vmatprep.subr.mxu0 0.0
    %177 = vmatpush1.msra.mxu0 0.0
    %178 = vmatprep.subr.mxu0 0.0
    %179 = vmatpush1.msra.mxu0 0.0
    %180 = vmatprep.subr.mxu0 0.0
    %181 = vmatpush1.msra.mxu0 0.0
    %182 = vmatprep.subr.mxu0 0.0
    %183 = vmatpush1.msra.mxu0 0.0
    %184 = vmatprep.subr.mxu0 0.0
    %185 = vmatpush1.msra.mxu0 0.0
    %186 = vmatprep.subr.mxu0 0.0
    %187 = vmatpush1.msra.mxu0 0.0
    %188 = vmatprep.subr.mxu0 0.0
    %189 = vmatpush1.msra.mxu0 0.0
    %190 = vmatprep.subr.mxu0 0.0
    %191 = vmatpush1.msra.mxu0 0.0
    %192 = vmatprep.subr.mxu0 0.0
    %193 = vmatpush1.msra.mxu0 0.0
    %194 = vmatprep.subr.mxu0 0.0
    %195 = vmatpush1.msra.mxu0 0.0
    %196 = vmatprep.subr.mxu0 0.0
    %197 = vmatpush1.msra.mxu0 0.0
    %198 = vmatprep.subr.mxu0 0.0
    %199 = vmatpush1.msra.mxu0 0.0
    %200 = vmatprep.subr.mxu0 0.0
    %201 = vmatpush1.msra.mxu0 0.0
    %202 = vmatprep.subr.mxu0 0.0
    %203 = vmatpush1.msra.mxu0 0.0
    %204 = vmatprep.subr.mxu0 0.0
    %205 = vmatpush1.msra.mxu0 0.0
    %206 = vmatprep.subr.mxu0 0.0
    %207 = vmatpush1.msra.mxu0 0.0
    %208 = vmatprep.subr.mxu0 0.0
    %209 = vmatpush1.msra.mxu0 0.0
    %210 = vmatprep.subr.mxu0 0.0
    %211 = vmatpush1.msra.mxu0 0.0
    %212 = vmatprep.subr.mxu0 0.0
    %213 = vmatpush1.msra.mxu0 0.0
    %214 = vmatprep.subr.mxu0 0.0
    %215 = vmatpush1.msra.mxu0 0.0
    %216 = vmatprep.subr.mxu0 0.0
    %217 = vmatpush1.msra.mxu0 0.0
    %218 = vmatprep.subr.mxu0 0.0
    %219 = vmatpush1.msra.mxu0 0.0
    %220 = vmatprep.subr.mxu0 0.0
    %221 = vmatpush1.msra.mxu0 0.0
    %222 = vmatprep.subr.mxu0 0.0
    %223 = vmatpush1.msra.mxu0 0.0
    %224 = vmatprep.subr.mxu0 0.0
    %225 = vmatpush1.msra.mxu0 0.0
    %226 = vmatprep.mubr.f32.mxu0 0.0
    %227 = vmatmul.mubr.f32.gmra.mrb[0].mxu0 %v55
    %v228 = vpop.f32.mrb[0].mxu0
    %v229 = vadd.f32 0.0, %v228
    %v230 = vpop.f32.mrb[0].mxu0
    %231 = vmatprep.mubr.f32.mxu0 0.0
    %232 = vmatmul.mubr.f32.gmra.mrb[0].mxu0 %v58
    %v233 = vpop.f32.mrb[0].mxu0
    %v234 = vadd.f32 0.0, %v233
    %v235 = vpop.f32.mrb[0].mxu0
    %236 = vmatprep.mubr.f32.mxu0 0.0
    %237 = vmatmul.mubr.f32.gmra.mrb[0].mxu0 %v61
    %v238 = vpop.f32.mrb[0].mxu0
    %v239 = vadd.f32 0.0, %v238
    %v240 = vpop.f32.mrb[0].mxu0
    %241 = vmatprep.mubr.f32.mxu0 0.0
    %242 = vmatmul.mubr.f32.gmra.mrb[0].mxu0 %v64
    %v243 = vpop.f32.mrb[0].mxu0
    %v244 = vadd.f32 0.0, %v243
    %v245 = vpop.f32.mrb[0].mxu0
    %246 = vdwg.mxu0
    %249 = vrot.lane.b32.xlu0 %v239, 4
    %v250 = vpop.permute.xlu0 %249
    %251 = vrot.lane.b32.xlu0 %v244, 4
    %v252 = vpop.permute.xlu0 %251
    %v255 = vsel %vm159, %v229, %v250
    %v256 = vsel %vm159, %v234, %v252
    %vm257 = vcmask 64512
    %258 = vst.msk [vmem:[%s11] sm:$0xff] %vm257, %v160
    %259 = vst.msk [vmem:[%s11 + $0x8] sm:$0xff] %vm257, %v161
    %260 = vst.msk [vmem:[%s11 + $0x10] sm:$0xff] %vm257, %v255
    %261 = vst.msk [vmem:[%s11 + $0x18] sm:$0xff] %vm257, %v256
    %v262 = vpack.c.bf16 %v161, %v160
    %v263 = vpack.c.bf16 %v256, %v255
    %v264 = vld [vmem:[%s2] sm:$0xf]
    %v266 = vsel %vm257, %v262, 0
    %v269 = vsel %vm257, %v263, 0
    %vm271 = vcmask 1043456
    %v273 = vsel %vm271, %v264, 0
    %275 = vmatprep.subr.bf16.mxu0 0
    %276 = vmatpush1.bf16.msra.mxu0 %v273
    %277 = vmatprep.subr.bf16.mxu0 0
    %278 = vmatpush1.bf16.msra.mxu0 0
    %279 = vmatprep.subr.bf16.mxu0 0
    %280 = vmatpush1.bf16.msra.mxu0 0
    %281 = vmatprep.subr.bf16.mxu0 0
    %282 = vmatpush1.bf16.msra.mxu0 0
    %283 = vmatprep.subr.bf16.mxu0 0
    %284 = vmatpush1.bf16.msra.mxu0 0
    %285 = vmatprep.subr.bf16.mxu0 0
    %286 = vmatpush1.bf16.msra.mxu0 0
    %287 = vmatprep.subr.bf16.mxu0 0
    %288 = vmatpush1.bf16.msra.mxu0 0
    %289 = vmatprep.subr.bf16.mxu0 0
    %290 = vmatpush1.bf16.msra.mxu0 0
    %291 = vmatprep.subr.bf16.mxu0 0
    %292 = vmatpush1.bf16.msra.mxu0 0
    %293 = vmatprep.subr.bf16.mxu0 0
    %294 = vmatpush1.bf16.msra.mxu0 0
    %295 = vmatprep.subr.bf16.mxu0 0
    %296 = vmatpush1.bf16.msra.mxu0 0
    %297 = vmatprep.subr.bf16.mxu0 0
    %298 = vmatpush1.bf16.msra.mxu0 0
    %299 = vmatprep.subr.bf16.mxu0 0
    %300 = vmatpush1.bf16.msra.mxu0 0
    %301 = vmatprep.subr.bf16.mxu0 0
    %302 = vmatpush1.bf16.msra.mxu0 0
    %303 = vmatprep.subr.bf16.mxu0 0
    %304 = vmatpush1.bf16.msra.mxu0 0
    %305 = vmatprep.subr.bf16.mxu0 0
    %306 = vmatpush1.bf16.msra.mxu0 0
    %307 = vmatprep.mubr.bf16.mxu0 0
    %308 = vmatmul.mubr.bf16.gmra.mrb[0].mxu0 %v266
    %v309 = vpop.f32.mrb[0].mxu0
    %v310 = vadd.f32 0.0, %v309
    %v311 = vpop.f32.mrb[0].mxu0
    %v312 = vpop.f32.mrb[0].mxu0
    %v313 = vadd.f32 0.0, %v312
    %v314 = vpop.f32.mrb[0].mxu0
    %315 = vmatprep.mubr.bf16.mxu0 0
    %316 = vmatmul.mubr.bf16.gmra.mrb[0].mxu0 %v269
    %v317 = vpop.f32.mrb[0].mxu0
    %v318 = vadd.f32 0.0, %v317
    %v319 = vpop.f32.mrb[0].mxu0
    %v320 = vpop.f32.mrb[0].mxu0
    %v321 = vadd.f32 0.0, %v320
    %v322 = vpop.f32.mrb[0].mxu0
    %323 = vdwg.mxu0
    %v324 = vsel %vm53, %v310, 0.0
    %v325 = vsel %vm53, %v313, 0.0
    %v326 = vadd.f32 %v324, %v325
    %v327 = vsel %vm53, %v318, 0.0
    %v328 = vadd.f32 %v326, %v327
    %v329 = vsel %vm53, %v321, 0.0
    %v330 = vadd.f32 %v328, %v329
    %v331 = vrot.slane %v330, 4
    %v332 = vadd.f32 %v330, %v331
    %v333 = vrot.slane %v332, 2
    %v334 = vadd.f32 %v332, %v333
    %v335 = vrot.slane %v334, 1
    %v336 = vadd.f32 %v334, %v335
    %v337 = vmul.f32 %v310, %v310
    %v338 = vmul.f32 %v313, %v313
    %v339 = vmul.f32 %v318, %v318
    %v340 = vmul.f32 %v321, %v321
    %v341 = vsel %vm53, %v337, 0.0
    %v342 = vsel %vm53, %v338, 0.0
    %v343 = vadd.f32 %v341, %v342
    %v344 = vsel %vm53, %v339, 0.0
    %v345 = vadd.f32 %v343, %v344
    %v346 = vsel %vm53, %v340, 0.0
    %v347 = vadd.f32 %v345, %v346
    %v348 = vrot.slane %v347, 4
    %v349 = vadd.f32 %v347, %v348
    %v350 = vrot.slane %v349, 2
    %v351 = vadd.f32 %v349, %v350
    %v352 = vrot.slane %v351, 1
    %v353 = vadd.f32 %v351, %v352
    %v354 = vmul.f32 %v336, 0.03125
    %v355 = vmul.f32 %v353, 0.03125
    %v356 = vmul.f32 %v354, %v354
    %v357 = vsub.f32 %v355, %v356
    %v358 = vsub.f32 %v310, %v354
    %v359 = vsub.f32 %v313, %v354
    %v360 = vsub.f32 %v318, %v354
    %v361 = vsub.f32 %v321, %v354
    %v362 = vadd.f32 %v357, 1e-05
    %v363 = vrsqrt.pop %v362
    %v364 = vmul.f32 %v358, %v363
    %v365 = vmul.f32 %v359, %v363
    %v366 = vmul.f32 %v360, %v363
    %v367 = vmul.f32 %v361, %v363
    %v368 = vlaneseq
    %v369 = vshrl.u32 %v368, 7
    %v370 = vsub.s32 0, %v369
    %v371 = vrot.slane %v43, %v370
    %v372 = vmul.f32 %v364, %v371
    %v373 = vmul.f32 %v365, %v371
    %v374 = vmul.f32 %v366, %v371
    %v375 = vmul.f32 %v367, %v371
    %v376 = vlaneseq
    %v377 = vshrl.u32 %v376, 7
    %v378 = vsub.s32 1, %v377
    %v379 = vrot.slane %v43, %v378
    %v380 = vadd.f32 %v372, %v379
    %v381 = vadd.f32 %v373, %v379
    %v382 = vadd.f32 %v374, %v379
    %v383 = vadd.f32 %v375, %v379
    %v384 = vpack.c.bf16 %v381, %v380
    %v385 = vpack.c.bf16 %v383, %v382
    %v386 = vld [vmem:[%s3] sm:$0xf]
    %v387 = vld [vmem:[%s3 + $0x4] sm:$0xf]
    %v390 = vunpack.c.l.b16 %v386
    %v391 = vunpack.c.l.b16 %v387
    %v392 = vpack.c.b16 %v391, %v390
    %v395 = vsel %vm53, %v384, 0
    %v398 = vsel %vm53, %v385, 0
    %400 = vmatprep.subr.bf16.mxu0 0
    %401 = vmatpush1.bf16.msra.mxu0 %v392
    %402 = vmatprep.subr.bf16.mxu0 0
    %403 = vmatpush1.bf16.msra.mxu0 0
    %404 = vmatprep.subr.bf16.mxu0 0
    %405 = vmatpush1.bf16.msra.mxu0 0
    %406 = vmatprep.subr.bf16.mxu0 0
    %407 = vmatpush1.bf16.msra.mxu0 0
    %408 = vmatprep.subr.bf16.mxu0 0
    %409 = vmatpush1.bf16.msra.mxu0 0
    %410 = vmatprep.subr.bf16.mxu0 0
    %411 = vmatpush1.bf16.msra.mxu0 0
    %412 = vmatprep.subr.bf16.mxu0 0
    %413 = vmatpush1.bf16.msra.mxu0 0
    %414 = vmatprep.subr.bf16.mxu0 0
    %415 = vmatpush1.bf16.msra.mxu0 0
    %416 = vmatprep.subr.bf16.mxu0 0
    %417 = vmatpush1.bf16.msra.mxu0 0
    %418 = vmatprep.subr.bf16.mxu0 0
    %419 = vmatpush1.bf16.msra.mxu0 0
    %420 = vmatprep.subr.bf16.mxu0 0
    %421 = vmatpush1.bf16.msra.mxu0 0
    %422 = vmatprep.subr.bf16.mxu0 0
    %423 = vmatpush1.bf16.msra.mxu0 0
    %424 = vmatprep.subr.bf16.mxu0 0
    %425 = vmatpush1.bf16.msra.mxu0 0
    %426 = vmatprep.subr.bf16.mxu0 0
    %427 = vmatpush1.bf16.msra.mxu0 0
    %428 = vmatprep.subr.bf16.mxu0 0
    %429 = vmatpush1.bf16.msra.mxu0 0
    %430 = vmatprep.subr.bf16.mxu0 0
    %431 = vmatpush1.bf16.msra.mxu0 0
    %432 = vmatprep.mubr.bf16.mxu0 0
    %433 = vmatmul.mubr.bf16.gmra.mrb[0].mxu0 %v395
    %v434 = vpop.f32.mrb[0].mxu0
    %v435 = vadd.f32 0.0, %v434
    %v436 = vpop.f32.mrb[0].mxu0
    %v437 = vpop.f32.mrb[0].mxu0
    %v438 = vadd.f32 0.0, %v437
    %v439 = vpop.f32.mrb[0].mxu0
    %440 = vmatprep.mubr.bf16.mxu0 0
    %441 = vmatmul.mubr.bf16.gmra.mrb[0].mxu0 %v398
    %v442 = vpop.f32.mrb[0].mxu0
    %v443 = vadd.f32 0.0, %v442
    %v444 = vpop.f32.mrb[0].mxu0
    %v445 = vpop.f32.mrb[0].mxu0
    %v446 = vadd.f32 0.0, %v445
    %v447 = vpop.f32.mrb[0].mxu0
    %448 = vdwg.mxu0
    %vm449 = vcmask 523264
    %v450 = vsel %vm449, %v435, 0.0
    %v451 = vsel %vm449, %v438, 0.0
    %v452 = vadd.f32 %v450, %v451
    %v453 = vsel %vm449, %v443, 0.0
    %v454 = vadd.f32 %v452, %v453
    %v455 = vsel %vm449, %v446, 0.0
    %v456 = vadd.f32 %v454, %v455
    %v457 = vrot.slane %v456, 4
    %v458 = vadd.f32 %v456, %v457
    %v459 = vrot.slane %v458, 2
    %v460 = vadd.f32 %v458, %v459
    %v461 = vrot.slane %v460, 1
    %v462 = vadd.f32 %v460, %v461
    %v463 = vmul.f32 %v435, %v435
    %v464 = vmul.f32 %v438, %v438
    %v465 = vmul.f32 %v443, %v443
    %v466 = vmul.f32 %v446, %v446
    %v467 = vsel %vm449, %v463, 0.0
    %v468 = vsel %vm449, %v464, 0.0
    %v469 = vadd.f32 %v467, %v468
    %v470 = vsel %vm449, %v465, 0.0
    %v471 = vadd.f32 %v469, %v470
    %v472 = vsel %vm449, %v466, 0.0
    %v473 = vadd.f32 %v471, %v472
    %v474 = vrot.slane %v473, 4
    %v475 = vadd.f32 %v473, %v474
    %v476 = vrot.slane %v475, 2
    %v477 = vadd.f32 %v475, %v476
    %v478 = vrot.slane %v477, 1
    %v479 = vadd.f32 %v477, %v478
    %v480 = vmul.f32 %v462, 0.03125
    %v481 = vmul.f32 %v479, 0.03125
    %v482 = vmul.f32 %v480, %v480
    %v483 = vsub.f32 %v481, %v482
    %v484 = vsub.f32 %v435, %v480
    %v485 = vsub.f32 %v438, %v480
    %v486 = vsub.f32 %v443, %v480
    %v487 = vsub.f32 %v446, %v480
    %v488 = vadd.f32 %v483, 1e-05
    %v489 = vrsqrt.pop %v488
    %v490 = vmul.f32 %v484, %v489
    %v491 = vmul.f32 %v485, %v489
    %v492 = vmul.f32 %v486, %v489
    %v493 = vmul.f32 %v487, %v489
    %v494 = vlaneseq
    %v495 = vshrl.u32 %v494, 7
    %v496 = vsub.s32 2, %v495
    %v497 = vrot.slane %v43, %v496
    %v498 = vmul.f32 %v490, %v497
    %v499 = vmul.f32 %v491, %v497
    %v500 = vmul.f32 %v492, %v497
    %v501 = vmul.f32 %v493, %v497
    %v502 = vlaneseq
    %v503 = vshrl.u32 %v502, 7
    %v504 = vsub.s32 3, %v503
    %v505 = vrot.slane %v43, %v504
    %v506 = vadd.f32 %v498, %v505
    %v507 = vadd.f32 %v499, %v505
    %v508 = vadd.f32 %v500, %v505
    %v509 = vadd.f32 %v501, %v505
    %v510 = vpack.c.bf16 %v507, %v506
    %v511 = vpack.c.bf16 %v509, %v508
    %v512 = vld [vmem:[%s4] sm:$0xf]
    %v513 = vld [vmem:[%s4 + $0x4] sm:$0xf]
    %v514 = vld [vmem:[%s4 + $0x8] sm:$0xf]
    %v515 = vld [vmem:[%s4 + $0xc] sm:$0xf]
    %v516 = vld [vmem:[%s4 + $0x10] sm:$0xf]
    %v517 = vld [vmem:[%s4 + $0x14] sm:$0xf]
    %v518 = vld [vmem:[%s4 + $0x18] sm:$0xf]
    %v519 = vld [vmem:[%s4 + $0x1c] sm:$0xf]
    %v528 = vunpack.c.l.b16 %v512
    %v529 = vunpack.c.l.b16 %v513
    %v530 = vunpack.c.l.b16 %v514
    %v531 = vunpack.c.l.b16 %v515
    %v532 = vunpack.c.l.b16 %v516
    %v533 = vunpack.c.l.b16 %v517
    %v534 = vunpack.c.l.b16 %v518
    %v535 = vunpack.c.l.b16 %v519
    %v536 = vpack.c.b16 %v529, %v528
    %v537 = vpack.c.b16 %v531, %v530
    %v538 = vpack.c.b16 %v533, %v532
    %v539 = vpack.c.b16 %v535, %v534
    %v545 = vsel %vm449, %v510, 0
    %v548 = vsel %vm449, %v511, 0
    %550 = vmatprep.subr.bf16.mxu0 0
    %551 = vmatpush1.bf16.msra.mxu0 %v536
    %552 = vmatprep.subr.bf16.mxu0 0
    %553 = vmatpush1.bf16.msra.mxu0 %v537
    %554 = vmatprep.subr.bf16.mxu0 0
    %555 = vmatpush1.bf16.msra.mxu0 %v538
    %556 = vmatprep.subr.bf16.mxu0 0
    %557 = vmatpush1.bf16.msra.mxu0 %v539
    %558 = vmatprep.subr.bf16.mxu0 0
    %559 = vmatpush1.bf16.msra.mxu0 0
    %560 = vmatprep.subr.bf16.mxu0 0
    %561 = vmatpush1.bf16.msra.mxu0 0
    %562 = vmatprep.subr.bf16.mxu0 0
    %563 = vmatpush1.bf16.msra.mxu0 0
    %564 = vmatprep.subr.bf16.mxu0 0
    %565 = vmatpush1.bf16.msra.mxu0 0
    %566 = vmatprep.subr.bf16.mxu0 0
    %567 = vmatpush1.bf16.msra.mxu0 0
    %568 = vmatprep.subr.bf16.mxu0 0
    %569 = vmatpush1.bf16.msra.mxu0 0
    %570 = vmatprep.subr.bf16.mxu0 0
    %571 = vmatpush1.bf16.msra.mxu0 0
    %572 = vmatprep.subr.bf16.mxu0 0
    %573 = vmatpush1.bf16.msra.mxu0 0
    %574 = vmatprep.subr.bf16.mxu0 0
    %575 = vmatpush1.bf16.msra.mxu0 0
    %576 = vmatprep.subr.bf16.mxu0 0
    %577 = vmatpush1.bf16.msra.mxu0 0
    %578 = vmatprep.subr.bf16.mxu0 0
    %579 = vmatpush1.bf16.msra.mxu0 0
    %580 = vmatprep.subr.bf16.mxu0 0
    %581 = vmatpush1.bf16.msra.mxu0 0
    %582 = vmatprep.mubr.bf16.mxu0 0
    %583 = vmatmul.mubr.bf16.gmra.mrb[0].mxu0 %v545
    %v584 = vpop.f32.mrb[0].mxu0
    %v585 = vadd.f32 0.0, %v584
    %v586 = vpop.f32.mrb[0].mxu0
    %v587 = vpop.f32.mrb[0].mxu0
    %v588 = vadd.f32 0.0, %v587
    %v589 = vpop.f32.mrb[0].mxu0
    %590 = vmatprep.mubr.bf16.mxu0 0
    %591 = vmatmul.mubr.bf16.gmra.mrb[0].mxu0 %v548
    %v592 = vpop.f32.mrb[0].mxu0
    %v593 = vadd.f32 0.0, %v592
    %v594 = vpop.f32.mrb[0].mxu0
    %v595 = vpop.f32.mrb[0].mxu0
    %v596 = vadd.f32 0.0, %v595
    %v597 = vpop.f32.mrb[0].mxu0
    %598 = vdwg.mxu0
    %vm599 = vcmask 261120
    %v600 = vsel %vm599, %v585, 0.0
    %v601 = vsel %vm599, %v588, 0.0
    %v602 = vadd.f32 %v600, %v601
    %v603 = vsel %vm599, %v593, 0.0
    %v604 = vadd.f32 %v602, %v603
    %v605 = vsel %vm599, %v596, 0.0
    %v606 = vadd.f32 %v604, %v605
    %v607 = vrot.slane %v606, 4
    %v608 = vadd.f32 %v606, %v607
    %v609 = vrot.slane %v608, 2
    %v610 = vadd.f32 %v608, %v609
    %v611 = vrot.slane %v610, 1
    %v612 = vadd.f32 %v610, %v611
    %v613 = vmul.f32 %v585, %v585
    %v614 = vmul.f32 %v588, %v588
    %v615 = vmul.f32 %v593, %v593
    %v616 = vmul.f32 %v596, %v596
    %v617 = vsel %vm599, %v613, 0.0
    %v618 = vsel %vm599, %v614, 0.0
    %v619 = vadd.f32 %v617, %v618
    %v620 = vsel %vm599, %v615, 0.0
    %v621 = vadd.f32 %v619, %v620
    %v622 = vsel %vm599, %v616, 0.0
    %v623 = vadd.f32 %v621, %v622
    %v624 = vrot.slane %v623, 4
    %v625 = vadd.f32 %v623, %v624
    %v626 = vrot.slane %v625, 2
    %v627 = vadd.f32 %v625, %v626
    %v628 = vrot.slane %v627, 1
    %v629 = vadd.f32 %v627, %v628
    %v630 = vmul.f32 %v612, 0.03125
    %v631 = vmul.f32 %v629, 0.03125
    %v632 = vmul.f32 %v630, %v630
    %v633 = vsub.f32 %v631, %v632
    %v634 = vsub.f32 %v585, %v630
    %v635 = vsub.f32 %v588, %v630
    %v636 = vsub.f32 %v593, %v630
    %v637 = vsub.f32 %v596, %v630
    %v638 = vadd.f32 %v633, 1e-05
    %v639 = vrsqrt.pop %v638
    %v640 = vmul.f32 %v634, %v639
    %v641 = vmul.f32 %v635, %v639
    %v642 = vmul.f32 %v636, %v639
    %v643 = vmul.f32 %v637, %v639
    %v644 = vlaneseq
    %v645 = vshrl.u32 %v644, 7
    %v646 = vsub.s32 4, %v645
    %v647 = vrot.slane %v43, %v646
    %v648 = vmul.f32 %v640, %v647
    %v649 = vmul.f32 %v641, %v647
    %v650 = vmul.f32 %v642, %v647
    %v651 = vmul.f32 %v643, %v647
    %v652 = vlaneseq
    %v653 = vshrl.u32 %v652, 7
    %v654 = vsub.s32 5, %v653
    %v655 = vrot.slane %v43, %v654
    %v656 = vadd.f32 %v648, %v655
    %v657 = vadd.f32 %v649, %v655
    %v658 = vadd.f32 %v650, %v655
    %v659 = vadd.f32 %v651, %v655
    %v660 = vpack.c.bf16 %v40, %v39
    %v661 = vpack.c.bf16 %v42, %v41
    %v662 = vld [vmem:[%s5] sm:$0x3]
    %v664 = vsel %vm159, %v660, 0
    %v667 = vsel %vm159, %v661, 0
    %vm669 = vcmask 1041408
    %v671 = vsel %vm669, %v662, 0
    %673 = vmatprep.subr.bf16.mxu0 0
    %674 = vmatpush1.bf16.msra.mxu0 %v671
    %675 = vmatprep.subr.bf16.mxu0 0
    %676 = vmatpush1.bf16.msra.mxu0 0
    %677 = vmatprep.subr.bf16.mxu0 0
    %678 = vmatpush1.bf16.msra.mxu0 0
    %679 = vmatprep.subr.bf16.mxu0 0
    %680 = vmatpush1.bf16.msra.mxu0 0
    %681 = vmatprep.subr.bf16.mxu0 0
    %682 = vmatpush1.bf16.msra.mxu0 0
    %683 = vmatprep.subr.bf16.mxu0 0
    %684 = vmatpush1.bf16.msra.mxu0 0
    %685 = vmatprep.subr.bf16.mxu0 0
    %686 = vmatpush1.bf16.msra.mxu0 0
    %687 = vmatprep.subr.bf16.mxu0 0
    %688 = vmatpush1.bf16.msra.mxu0 0
    %689 = vmatprep.subr.bf16.mxu0 0
    %690 = vmatpush1.bf16.msra.mxu0 0
    %691 = vmatprep.subr.bf16.mxu0 0
    %692 = vmatpush1.bf16.msra.mxu0 0
    %693 = vmatprep.subr.bf16.mxu0 0
    %694 = vmatpush1.bf16.msra.mxu0 0
    %695 = vmatprep.subr.bf16.mxu0 0
    %696 = vmatpush1.bf16.msra.mxu0 0
    %697 = vmatprep.subr.bf16.mxu0 0
    %698 = vmatpush1.bf16.msra.mxu0 0
    %699 = vmatprep.subr.bf16.mxu0 0
    %700 = vmatpush1.bf16.msra.mxu0 0
    %701 = vmatprep.subr.bf16.mxu0 0
    %702 = vmatpush1.bf16.msra.mxu0 0
    %703 = vmatprep.subr.bf16.mxu0 0
    %704 = vmatpush1.bf16.msra.mxu0 0
    %705 = vmatprep.mubr.bf16.mxu0 0
    %706 = vmatmul.mubr.bf16.gmra.mrb[0].mxu0 %v664
    %v707 = vpop.f32.mrb[0].mxu0
    %v708 = vadd.f32 0.0, %v707
    %v709 = vpop.f32.mrb[0].mxu0
    %v710 = vpop.f32.mrb[0].mxu0
    %v711 = vadd.f32 0.0, %v710
    %v712 = vpop.f32.mrb[0].mxu0
    %713 = vmatprep.mubr.bf16.mxu0 0
    %714 = vmatmul.mubr.bf16.gmra.mrb[0].mxu0 %v667
    %v715 = vpop.f32.mrb[0].mxu0
    %v716 = vadd.f32 0.0, %v715
    %v717 = vpop.f32.mrb[0].mxu0
    %v718 = vpop.f32.mrb[0].mxu0
    %v719 = vadd.f32 0.0, %v718
    %v720 = vpop.f32.mrb[0].mxu0
    %721 = vdwg.mxu0
    %v722 = vrot.slane %v708, 7
    %v723 = vrot.slane %v711, 7
    %v724 = vrot.slane %v716, 7
    %v725 = vrot.slane %v719, 7
    %v726 = vlaneseq
    %v727 = vshrl.u32 %v726, 7
    %vm728 = vcmp.lt.s32.totalorder %v727, 1
    %v729 = vsel %vm728, %v724, %v725
    %v730 = vsel %vm728, %v723, %v724
    %v731 = vsel %vm728, %v722, %v723
    %v732 = vsel %vm728, %v725, %v722
    %734 = vset.pattern.permute.xlu0 0
    %735 = vperm.xlu0 %734, %v45
    %v736 = vpop.permute.xlu0 %735
    %739 = vset.pattern.permute.xlu0 0
    %740 = vperm.xlu0 %739, %v46
    %v741 = vpop.permute.xlu0 %740
    %744 = vset.pattern.permute.xlu0 0
    %745 = vperm.xlu0 %744, %v47
    %v746 = vpop.permute.xlu0 %745
    %749 = vset.pattern.permute.xlu0 0
    %750 = vperm.xlu0 %749, %v48
    %v751 = vpop.permute.xlu0 %750
    %v753 = vmul.f32 %v732, %v736
    %v754 = vmul.f32 %v731, %v741
    %v755 = vmul.f32 %v730, %v746
    %v756 = vmul.f32 %v729, %v751
    %761 = vrot.lane.b32.xlu0 %v708, 64
    %v762 = vpop.permute.xlu0 %761
    %763 = vrot.lane.b32.xlu0 %v711, 64
    %v764 = vpop.permute.xlu0 %763
    %765 = vrot.lane.b32.xlu0 %v716, 64
    %v766 = vpop.permute.xlu0 %765
    %767 = vrot.lane.b32.xlu0 %v719, 64
    %v768 = vpop.permute.xlu0 %767
    %v773 = vrot.slane %v762, 1
    %v774 = vrot.slane %v764, 1
    %v775 = vrot.slane %v766, 1
    %v776 = vrot.slane %v768, 1
    %vm777 = vcmp.lt.s32.totalorder %v727, 7
    %v778 = vsel %vm777, %v775, %v776
    %v779 = vsel %vm777, %v774, %v775
    %v780 = vsel %vm777, %v773, %v774
    %v781 = vsel %vm777, %v776, %v773
    %782 = vset.pattern.permute.xlu0 1
    %783 = vperm.xlu0 %782, %v45
    %v784 = vpop.permute.xlu0 %783
    %786 = vset.pattern.permute.xlu0 1
    %787 = vperm.xlu0 %786, %v46
    %v788 = vpop.permute.xlu0 %787
    %790 = vset.pattern.permute.xlu0 1
    %791 = vperm.xlu0 %790, %v47
    %v792 = vpop.permute.xlu0 %791
    %794 = vset.pattern.permute.xlu0 1
    %795 = vperm.xlu0 %794, %v48
    %v796 = vpop.permute.xlu0 %795
    %v798 = vmul.f32 %v780, %v784
    %v799 = vmul.f32 %v779, %v788
    %v800 = vmul.f32 %v778, %v792
    %v801 = vmul.f32 %v781, %v796
    %802 = vrot.lane.b32.xlu0 %v708, 96
    %v803 = vpop.permute.xlu0 %802
    %804 = vrot.lane.b32.xlu0 %v711, 96
    %v805 = vpop.permute.xlu0 %804
    %806 = vrot.lane.b32.xlu0 %v716, 96
    %v807 = vpop.permute.xlu0 %806
    %808 = vrot.lane.b32.xlu0 %v719, 96
    %v809 = vpop.permute.xlu0 %808
    %v814 = vadd.f32 %v753, %v803
    %v815 = vadd.f32 %v754, %v805
    %v816 = vadd.f32 %v755, %v807
    %v817 = vadd.f32 %v756, %v809
    %v818 = vadd.f32 %v814, %v798
    %v819 = vadd.f32 %v815, %v799
    %v820 = vadd.f32 %v816, %v800
    %v821 = vadd.f32 %v817, %v801
    %v822 = vsel %vm599, %v818, 0.0
    %v823 = vsel %vm599, %v819, 0.0
    %v824 = vadd.f32 %v822, %v823
    %v825 = vsel %vm599, %v820, 0.0
    %v826 = vadd.f32 %v824, %v825
    %v827 = vsel %vm599, %v821, 0.0
    %v828 = vadd.f32 %v826, %v827
    %v829 = vrot.slane %v828, 4
    %v830 = vadd.f32 %v828, %v829
    %v831 = vrot.slane %v830, 2
    %v832 = vadd.f32 %v830, %v831
    %v833 = vrot.slane %v832, 1
    %v834 = vadd.f32 %v832, %v833
    %v835 = vmul.f32 %v818, %v818
    %v836 = vmul.f32 %v819, %v819
    %v837 = vmul.f32 %v820, %v820
    %v838 = vmul.f32 %v821, %v821
    %v839 = vsel %vm599, %v835, 0.0
    %v840 = vsel %vm599, %v836, 0.0
    %v841 = vadd.f32 %v839, %v840
    %v842 = vsel %vm599, %v837, 0.0
    %v843 = vadd.f32 %v841, %v842
    %v844 = vsel %vm599, %v838, 0.0
    %v845 = vadd.f32 %v843, %v844
    %v846 = vrot.slane %v845, 4
    %v847 = vadd.f32 %v845, %v846
    %v848 = vrot.slane %v847, 2
    %v849 = vadd.f32 %v847, %v848
    %v850 = vrot.slane %v849, 1
    %v851 = vadd.f32 %v849, %v850
    %v852 = vmul.f32 %v834, 0.03125
    %v853 = vmul.f32 %v851, 0.03125
    %v854 = vmul.f32 %v852, %v852
    %v855 = vsub.f32 %v853, %v854
    %v856 = vsub.f32 %v818, %v852
    %v857 = vsub.f32 %v819, %v852
    %v858 = vsub.f32 %v820, %v852
    %v859 = vsub.f32 %v821, %v852
    %v860 = vadd.f32 %v855, 1e-05
    %v861 = vrsqrt.pop %v860
    %v862 = vmul.f32 %v856, %v861
    %v863 = vmul.f32 %v857, %v861
    %v864 = vmul.f32 %v858, %v861
    %v865 = vmul.f32 %v859, %v861
    %v866 = vlaneseq
    %v867 = vshrl.u32 %v866, 7
    %v868 = vsub.s32 6, %v867
    %v869 = vrot.slane %v43, %v868
    %v870 = vmul.f32 %v862, %v869
    %v871 = vmul.f32 %v863, %v869
    %v872 = vmul.f32 %v864, %v869
    %v873 = vmul.f32 %v865, %v869
    %v874 = vlaneseq
    %v875 = vshrl.u32 %v874, 7
    %v876 = vsub.s32 7, %v875
    %v877 = vrot.slane %v43, %v876
    %v878 = vadd.f32 %v870, %v877
    %v879 = vadd.f32 %v871, %v877
    %v880 = vadd.f32 %v872, %v877
    %v881 = vadd.f32 %v873, %v877
    %v882 = vmax.f32 %v878, 0.0
    %v883 = vmax.f32 %v879, 0.0
    %v884 = vmax.f32 %v880, 0.0
    %v885 = vmax.f32 %v881, 0.0
    %v886 = vpack.c.bf16 %v883, %v882
    %v887 = vpack.c.bf16 %v885, %v884
    %v888 = vld [vmem:[%s6] sm:$0xf]
    %v889 = vld [vmem:[%s6 + $0x4] sm:$0xf]
    %v890 = vld [vmem:[%s6 + $0x8] sm:$0xf]
    %v891 = vld [vmem:[%s6 + $0xc] sm:$0xf]
    %v896 = vunpack.c.l.b16 %v888
    %v897 = vunpack.c.l.b16 %v889
    %v898 = vunpack.c.l.b16 %v890
    %v899 = vunpack.c.l.b16 %v891
    %v900 = vpack.c.b16 %v897, %v896
    %v901 = vpack.c.b16 %v899, %v898
    %v905 = vsel %vm599, %v886, 0
    %v908 = vsel %vm599, %v887, 0
    %910 = vmatprep.subr.bf16.mxu0 0
    %911 = vmatpush1.bf16.msra.mxu0 %v900
    %912 = vmatprep.subr.bf16.mxu0 0
    %913 = vmatpush1.bf16.msra.mxu0 %v901
    %914 = vmatprep.subr.bf16.mxu0 0
    %915 = vmatpush1.bf16.msra.mxu0 0
    %916 = vmatprep.subr.bf16.mxu0 0
    %917 = vmatpush1.bf16.msra.mxu0 0
    %918 = vmatprep.subr.bf16.mxu0 0
    %919 = vmatpush1.bf16.msra.mxu0 0
    %920 = vmatprep.subr.bf16.mxu0 0
    %921 = vmatpush1.bf16.msra.mxu0 0
    %922 = vmatprep.subr.bf16.mxu0 0
    %923 = vmatpush1.bf16.msra.mxu0 0
    %924 = vmatprep.subr.bf16.mxu0 0
    %925 = vmatpush1.bf16.msra.mxu0 0
    %926 = vmatprep.subr.bf16.mxu0 0
    %927 = vmatpush1.bf16.msra.mxu0 0
    %928 = vmatprep.subr.bf16.mxu0 0
    %929 = vmatpush1.bf16.msra.mxu0 0
    %930 = vmatprep.subr.bf16.mxu0 0
    %931 = vmatpush1.bf16.msra.mxu0 0
    %932 = vmatprep.subr.bf16.mxu0 0
    %933 = vmatpush1.bf16.msra.mxu0 0
    %934 = vmatprep.subr.bf16.mxu0 0
    %935 = vmatpush1.bf16.msra.mxu0 0
    %936 = vmatprep.subr.bf16.mxu0 0
    %937 = vmatpush1.bf16.msra.mxu0 0
    %938 = vmatprep.subr.bf16.mxu0 0
    %939 = vmatpush1.bf16.msra.mxu0 0
    %940 = vmatprep.subr.bf16.mxu0 0
    %941 = vmatpush1.bf16.msra.mxu0 0
    %942 = vmatprep.mubr.bf16.mxu0 0
    %943 = vmatmul.mubr.bf16.gmra.mrb[0].mxu0 %v905
    %v944 = vpop.f32.mrb[0].mxu0
    %v945 = vadd.f32 0.0, %v944
    %v946 = vpop.f32.mrb[0].mxu0
    %v947 = vpop.f32.mrb[0].mxu0
    %v948 = vadd.f32 0.0, %v947
    %v949 = vpop.f32.mrb[0].mxu0
    %950 = vmatprep.mubr.bf16.mxu0 0
    %951 = vmatmul.mubr.bf16.gmra.mrb[0].mxu0 %v908
    %v952 = vpop.f32.mrb[0].mxu0
    %v953 = vadd.f32 0.0, %v952
    %v954 = vpop.f32.mrb[0].mxu0
    %v955 = vpop.f32.mrb[0].mxu0
    %v956 = vadd.f32 0.0, %v955
    %v957 = vpop.f32.mrb[0].mxu0
    %958 = vdwg.mxu0
    %v959 = vrot.slane %v945, 7
    %v960 = vrot.slane %v948, 7
    %v961 = vrot.slane %v953, 7
    %v962 = vrot.slane %v956, 7
    %v963 = vsel %vm728, %v961, %v962
    %v964 = vsel %vm728, %v960, %v961
    %v965 = vsel %vm728, %v959, %v960
    %v966 = vsel %vm728, %v962, %v959
    %v967 = vmul.f32 %v966, %v736
    %v968 = vmul.f32 %v965, %v741
    %v969 = vmul.f32 %v964, %v746
    %v970 = vmul.f32 %v963, %v751
    %975 = vrot.lane.b32.xlu0 %v945, 64
    %v976 = vpop.permute.xlu0 %975
    %977 = vrot.lane.b32.xlu0 %v948, 64
    %v978 = vpop.permute.xlu0 %977
    %979 = vrot.lane.b32.xlu0 %v953, 64
    %v980 = vpop.permute.xlu0 %979
    %981 = vrot.lane.b32.xlu0 %v956, 64
    %v982 = vpop.permute.xlu0 %981
    %v987 = vrot.slane %v976, 1
    %v988 = vrot.slane %v978, 1
    %v989 = vrot.slane %v980, 1
    %v990 = vrot.slane %v982, 1
    %v991 = vsel %vm777, %v989, %v990
    %v992 = vsel %vm777, %v988, %v989
    %v993 = vsel %vm777, %v987, %v988
    %v994 = vsel %vm777, %v990, %v987
    %v995 = vmul.f32 %v993, %v784
    %v996 = vmul.f32 %v992, %v788
    %v997 = vmul.f32 %v991, %v792
    %v998 = vmul.f32 %v994, %v796
    %999 = vrot.lane.b32.xlu0 %v945, 96
    %v1000 = vpop.permute.xlu0 %999
    %1001 = vrot.lane.b32.xlu0 %v948, 96
    %v1002 = vpop.permute.xlu0 %1001
    %1003 = vrot.lane.b32.xlu0 %v953, 96
    %v1004 = vpop.permute.xlu0 %1003
    %1005 = vrot.lane.b32.xlu0 %v956, 96
    %v1006 = vpop.permute.xlu0 %1005
    %v1011 = vadd.f32 %v967, %v1000
    %v1012 = vadd.f32 %v968, %v1002
    %v1013 = vadd.f32 %v969, %v1004
    %v1014 = vadd.f32 %v970, %v1006
    %v1015 = vadd.f32 %v1011, %v995
    %v1016 = vadd.f32 %v1012, %v996
    %v1017 = vadd.f32 %v1013, %v997
    %v1018 = vadd.f32 %v1014, %v998
    %v1019 = vsel %vm599, %v1015, 0.0
    %v1020 = vsel %vm599, %v1016, 0.0
    %v1021 = vadd.f32 %v1019, %v1020
    %v1022 = vsel %vm599, %v1017, 0.0
    %v1023 = vadd.f32 %v1021, %v1022
    %v1024 = vsel %vm599, %v1018, 0.0
    %v1025 = vadd.f32 %v1023, %v1024
    %v1026 = vrot.slane %v1025, 4
    %v1027 = vadd.f32 %v1025, %v1026
    %v1028 = vrot.slane %v1027, 2
    %v1029 = vadd.f32 %v1027, %v1028
    %v1030 = vrot.slane %v1029, 1
    %v1031 = vadd.f32 %v1029, %v1030
    %v1032 = vmul.f32 %v1015, %v1015
    %v1033 = vmul.f32 %v1016, %v1016
    %v1034 = vmul.f32 %v1017, %v1017
    %v1035 = vmul.f32 %v1018, %v1018
    %v1036 = vsel %vm599, %v1032, 0.0
    %v1037 = vsel %vm599, %v1033, 0.0
    %v1038 = vadd.f32 %v1036, %v1037
    %v1039 = vsel %vm599, %v1034, 0.0
    %v1040 = vadd.f32 %v1038, %v1039
    %v1041 = vsel %vm599, %v1035, 0.0
    %v1042 = vadd.f32 %v1040, %v1041
    %v1043 = vrot.slane %v1042, 4
    %v1044 = vadd.f32 %v1042, %v1043
    %v1045 = vrot.slane %v1044, 2
    %v1046 = vadd.f32 %v1044, %v1045
    %v1047 = vrot.slane %v1046, 1
    %v1048 = vadd.f32 %v1046, %v1047
    %v1049 = vmul.f32 %v1031, 0.03125
    %v1050 = vmul.f32 %v1048, 0.03125
    %v1051 = vmul.f32 %v1049, %v1049
    %v1052 = vsub.f32 %v1050, %v1051
    %v1053 = vsub.f32 %v1015, %v1049
    %v1054 = vsub.f32 %v1016, %v1049
    %v1055 = vsub.f32 %v1017, %v1049
    %v1056 = vsub.f32 %v1018, %v1049
    %v1057 = vadd.f32 %v1052, 1e-05
    %v1058 = vrsqrt.pop %v1057
    %v1059 = vmul.f32 %v1053, %v1058
    %v1060 = vmul.f32 %v1054, %v1058
    %v1061 = vmul.f32 %v1055, %v1058
    %v1062 = vmul.f32 %v1056, %v1058
    %v1063 = vlaneseq
    %v1064 = vshrl.u32 %v1063, 7
    %v1065 = vsub.s32 0, %v1064
    %v1066 = vrot.slane %v44, %v1065
    %v1067 = vmul.f32 %v1059, %v1066
    %v1068 = vmul.f32 %v1060, %v1066
    %v1069 = vmul.f32 %v1061, %v1066
    %v1070 = vmul.f32 %v1062, %v1066
    %v1071 = vlaneseq
    %v1072 = vshrl.u32 %v1071, 7
    %v1073 = vsub.s32 1, %v1072
    %v1074 = vrot.slane %v44, %v1073
    %v1075 = vadd.f32 %v1067, %v1074
    %v1076 = vadd.f32 %v1068, %v1074
    %v1077 = vadd.f32 %v1069, %v1074
    %v1078 = vadd.f32 %v1070, %v1074
    %v1079 = vld [vmem:[%s8] sm:$0x3]
    %v1081 = vsel %vm599, %v1079, 0
    %1083 = vmatprep.subr.mxu0 0.0
    %1084 = vmatpush1.msra.mxu0 %v656
    %1085 = vmatprep.subr.mxu0 0.0
    %1086 = vmatpush1.msra.mxu0 %v657
    %1087 = vmatprep.subr.mxu0 0.0
    %1088 = vmatpush1.msra.mxu0 %v658
    %1089 = vmatprep.subr.mxu0 0.0
    %1090 = vmatpush1.msra.mxu0 %v659
    %1091 = vmatprep.subr.mxu0 0.0
    %1092 = vmatpush1.msra.mxu0 0.0
    %1093 = vmatprep.subr.mxu0 0.0
    %1094 = vmatpush1.msra.mxu0 0.0
    %1095 = vmatprep.subr.mxu0 0.0
    %1096 = vmatpush1.msra.mxu0 0.0
    %1097 = vmatprep.subr.mxu0 0.0
    %1098 = vmatpush1.msra.mxu0 0.0
    %1099 = vmatprep.subr.mxu0 0.0
    %1100 = vmatpush1.msra.mxu0 0.0
    %1101 = vmatprep.subr.mxu0 0.0
    %1102 = vmatpush1.msra.mxu0 0.0
    %1103 = vmatprep.subr.mxu0 0.0
    %1104 = vmatpush1.msra.mxu0 0.0
    %1105 = vmatprep.subr.mxu0 0.0
    %1106 = vmatpush1.msra.mxu0 0.0
    %1107 = vmatprep.subr.mxu0 0.0
    %1108 = vmatpush1.msra.mxu0 0.0
    %1109 = vmatprep.subr.mxu0 0.0
    %1110 = vmatpush1.msra.mxu0 0.0
    %1111 = vmatprep.subr.mxu0 0.0
    %1112 = vmatpush1.msra.mxu0 0.0
    %1113 = vmatprep.subr.mxu0 0.0
    %1114 = vmatpush1.msra.mxu0 0.0
    %1115 = vmatprep.subr.mxu0 0.0
    %1116 = vmatpush1.msra.mxu0 0.0
    %1117 = vmatprep.subr.mxu0 0.0
    %1118 = vmatpush1.msra.mxu0 0.0
    %1119 = vmatprep.subr.mxu0 0.0
    %1120 = vmatpush1.msra.mxu0 0.0
    %1121 = vmatprep.subr.mxu0 0.0
    %1122 = vmatpush1.msra.mxu0 0.0
    %1123 = vmatprep.subr.mxu0 0.0
    %1124 = vmatpush1.msra.mxu0 0.0
    %1125 = vmatprep.subr.mxu0 0.0
    %1126 = vmatpush1.msra.mxu0 0.0
    %1127 = vmatprep.subr.mxu0 0.0
    %1128 = vmatpush1.msra.mxu0 0.0
    %1129 = vmatprep.subr.mxu0 0.0
    %1130 = vmatpush1.msra.mxu0 0.0
    %1131 = vmatprep.subr.mxu0 0.0
    %1132 = vmatpush1.msra.mxu0 0.0
    %1133 = vmatprep.subr.mxu0 0.0
    %1134 = vmatpush1.msra.mxu0 0.0
    %1135 = vmatprep.subr.mxu0 0.0
    %1136 = vmatpush1.msra.mxu0 0.0
    %1137 = vmatprep.subr.mxu0 0.0
    %1138 = vmatpush1.msra.mxu0 0.0
    %1139 = vmatprep.subr.mxu0 0.0
    %1140 = vmatpush1.msra.mxu0 0.0
    %1141 = vmatprep.subr.mxu0 0.0
    %1142 = vmatpush1.msra.mxu0 0.0
    %1143 = vmatprep.subr.mxu0 0.0
    %1144 = vmatpush1.msra.mxu0 0.0
    %1145 = vmatprep.subr.mxu0 0.0
    %1146 = vmatpush1.msra.mxu0 0.0
    %1147 = vmatprep.mubr.f32.mxu0 0.0
    %1148 = vmatmul.mubr.f32.gmra.mrb[0].mxu0 %v1081
    %v1149 = vpop.f32.mrb[0].mxu0
    %v1150 = vadd.f32 0.0, %v1149
    %v1151 = vpop.f32.mrb[0].mxu0
    %1152 = vdwg.mxu0
    %1153 = vmatprep.subr.mxu0 0.0
    %1154 = vmatpush1.msra.mxu0 %v1075
    %1155 = vmatprep.subr.mxu0 0.0
    %1156 = vmatpush1.msra.mxu0 %v1076
    %1157 = vmatprep.subr.mxu0 0.0
    %1158 = vmatpush1.msra.mxu0 %v1077
    %1159 = vmatprep.subr.mxu0 0.0
    %1160 = vmatpush1.msra.mxu0 %v1078
    %1161 = vmatprep.subr.mxu0 0.0
    %1162 = vmatpush1.msra.mxu0 0.0
    %1163 = vmatprep.subr.mxu0 0.0
    %1164 = vmatpush1.msra.mxu0 0.0
    %1165 = vmatprep.subr.mxu0 0.0
    %1166 = vmatpush1.msra.mxu0 0.0
    %1167 = vmatprep.subr.mxu0 0.0
    %1168 = vmatpush1.msra.mxu0 0.0
    %1169 = vmatprep.subr.mxu0 0.0
    %1170 = vmatpush1.msra.mxu0 0.0
    %1171 = vmatprep.subr.mxu0 0.0
    %1172 = vmatpush1.msra.mxu0 0.0
    %1173 = vmatprep.subr.mxu0 0.0
    %1174 = vmatpush1.msra.mxu0 0.0
    %1175 = vmatprep.subr.mxu0 0.0
    %1176 = vmatpush1.msra.mxu0 0.0
    %1177 = vmatprep.subr.mxu0 0.0
    %1178 = vmatpush1.msra.mxu0 0.0
    %1179 = vmatprep.subr.mxu0 0.0
    %1180 = vmatpush1.msra.mxu0 0.0
    %1181 = vmatprep.subr.mxu0 0.0
    %1182 = vmatpush1.msra.mxu0 0.0
    %1183 = vmatprep.subr.mxu0 0.0
    %1184 = vmatpush1.msra.mxu0 0.0
    %1185 = vmatprep.subr.mxu0 0.0
    %1186 = vmatpush1.msra.mxu0 0.0
    %1187 = vmatprep.subr.mxu0 0.0
    %1188 = vmatpush1.msra.mxu0 0.0
    %1189 = vmatprep.subr.mxu0 0.0
    %1190 = vmatpush1.msra.mxu0 0.0
    %1191 = vmatprep.subr.mxu0 0.0
    %1192 = vmatpush1.msra.mxu0 0.0
    %1193 = vmatprep.subr.mxu0 0.0
    %1194 = vmatpush1.msra.mxu0 0.0
    %1195 = vmatprep.subr.mxu0 0.0
    %1196 = vmatpush1.msra.mxu0 0.0
    %1197 = vmatprep.subr.mxu0 0.0
    %1198 = vmatpush1.msra.mxu0 0.0
    %1199 = vmatprep.subr.mxu0 0.0
    %1200 = vmatpush1.msra.mxu0 0.0
    %1201 = vmatprep.subr.mxu0 0.0
    %1202 = vmatpush1.msra.mxu0 0.0
    %1203 = vmatprep.subr.mxu0 0.0
    %1204 = vmatpush1.msra.mxu0 0.0
    %1205 = vmatprep.subr.mxu0 0.0
    %1206 = vmatpush1.msra.mxu0 0.0
    %1207 = vmatprep.subr.mxu0 0.0
    %1208 = vmatpush1.msra.mxu0 0.0
    %1209 = vmatprep.subr.mxu0 0.0
    %1210 = vmatpush1.msra.mxu0 0.0
    %1211 = vmatprep.subr.mxu0 0.0
    %1212 = vmatpush1.msra.mxu0 0.0
    %1213 = vmatprep.subr.mxu0 0.0
    %1214 = vmatpush1.msra.mxu0 0.0
    %1215 = vmatprep.subr.mxu0 0.0
    %1216 = vmatpush1.msra.mxu0 0.0
    %1217 = vmatprep.mubr.f32.mxu0 0.0
    %1218 = vmatmul.mubr.f32.gmra.mrb[0].mxu0 %v1081
    %v1219 = vpop.f32.mrb[0].mxu0
    %v1220 = vadd.f32 0.0, %v1219
    %v1221 = vpop.f32.mrb[0].mxu0
    %1222 = vdwg.mxu0
    %1224 = vrot.lane.b32.xlu0 %v1220, 32
    %v1225 = vpop.permute.xlu0 %1224
    %v1227 = vsel %vm599, %v1150, %v1225
    %vm1228 = vcmask 517120
    %1229 = vst.msk [vmem:[#allocation2] sm:$0x3] %vm1228, %v1227
    // Predicated region
    $region42: #{tpu_custom_call.1} parent=1 // pred_check
      _
    $region43: #{tpu_custom_call.1} parent=1 // pred_check_branch
      %1231 = sbr.rel (0) target = $region45
    $region44: #{tpu_custom_call.1} parent=1 // pred_region
      %s1233 = ssub.s32 32, 32
      %1234 = vsyncadd [#allocation3], %s1233
      %s1236 = sshll.u32 [#allocation2], 4
      %s1237 = int_to_ptr.vmem [resolvable:$true] %s1236
      %1239 = dma.vmem_to_hbm [thread:$0]  %s1237, 32, %s10, [#allocation3]
    $region45: #{tpu_custom_call.1} parent=1 // pred_fallthru
      _
    // Predicated region
    $region46: #{tpu_custom_call.1} parent=1 // pred_check
      _
    $region47: #{tpu_custom_call.1} parent=1 // pred_check_branch
      %1241 = sbr.rel (0) target = $region49
    $region48: #{tpu_custom_call.1} parent=1 // pred_region
      _
    $region49: #{tpu_custom_call.1} parent=1 // pred_fallthru
      _
    // Predicated region
    $region50: #{tpu_custom_call.1} parent=1 // pred_check
      _
    $region51: #{tpu_custom_call.1} parent=1 // pred_check_branch
      %1243 = sbr.rel (0) target = $region53
    $region52: #{tpu_custom_call.1} parent=1 // pred_region
      %1244 = dma.done [#allocation3], 32
    $region53: #{tpu_custom_call.1} parent=1 // pred_fallthru
      _
    // Predicated region
    $region54: #{tpu_custom_call.1} parent=1 // pred_check
      _
    $region55: #{tpu_custom_call.1} parent=1 // pred_check_branch
      %1246 = sbr.rel (0) target = $region57
    $region56: #{tpu_custom_call.1} parent=1 // pred_region
      _
    $region57: #{tpu_custom_call.1} parent=1 // pred_fallthru
      _
    %1247 = vsyncpa [#allocation3], 1

</llo_original>
